<compile_context>
chip_gen: v7x
topology: tpu7x:2x2x1
jax: 0.10.0
libtpu: 0.0.40
codegen_flags: <defaults>
</compile_context>

<pallas_src>
import math
import functools

import jax
import jax.numpy as jnp
from jax import lax
from jax.experimental import pallas as pl
from jax.experimental.pallas import tpu as pltpu

_MIB = 1024 * 1024


# -----------------------------------------------------------------------------
# Helpers
# -----------------------------------------------------------------------------
def _pick_tile(n, target, align=16):
    """Largest divisor of n that is <= target and a multiple of `align`, else n."""
    if n <= target:
        return n
    for t in range(target, align - 1, -1):
        if n % t == 0 and t % align == 0:
            return t
    return n


def _heads_per_block(num_heads, head_size):
    """Smallest head group whose column width is a multiple of 128 lanes;
    fall back to all heads (block width == hidden, a full array dim).  The
    fallback is guarded downstream by shrinking the q tile so the statically
    unrolled per-head f32 intermediates stay within the VMEM budget."""
    for g in range(1, num_heads + 1):
        if num_heads % g == 0 and (g * head_size) % 128 == 0:
            return g
    return num_heads


def _vmem_ceiling():
    """Generation-aware scoped-VMEM ceiling: ~75% of physical VMEM
    (v7x: ~48 MiB of 64, v5e/v6e: ~96 MiB of 128), leaving headroom for
    Mosaic internal scratch and double buffers."""
    cap = 128 * _MIB
    try:
        info_fn = getattr(pltpu, "get_tpu_info", None)
        if info_fn is not None:
            cap = int(getattr(info_fn(), "vmem_capacity_bytes", cap))
    except Exception:
        pass
    return max(32 * _MIB, (cap * 3) // 4)


def _compiler_params(semantics, vmem_bytes):
    return pltpu.CompilerParams(
        dimension_semantics=semantics,
        vmem_limit_bytes=int(min(max(int(vmem_bytes), 32 * _MIB), _vmem_ceiling())),
    )


def _cost_estimate(flops, transcendentals, bytes_accessed):
    try:
        return pl.CostEstimate(flops=int(flops),
                               transcendentals=int(transcendentals),
                               bytes_accessed=int(bytes_accessed))
    except Exception:
        return None


# -----------------------------------------------------------------------------
# Kernel 1: fused Q/K/V projection.  The [H, 3H] weight stays resident; three
# [tm, H] x [H, H] MXU matmuls per (batch, seq-tile) grid step, each slice
# bias-added and cast before the next -> peak f32 intermediate is [tm, H].
# -----------------------------------------------------------------------------
def _qkv_proj_kernel(x_ref, w_ref, b_ref, q_ref, k_ref, v_ref, *, hidden):
    x = x_ref[0]                                   # [tm, H]
    b = b_ref[...]                                 # [1, 3H] f32
    outs = (q_ref, k_ref, v_ref)
    for idx in range(3):                           # static unroll: q, k, v
        lo, hi = idx * hidden, (idx + 1) * hidden
        y = jnp.dot(x, w_ref[:, lo:hi],
                    preferred_element_type=jnp.float32)      # [tm, H] f32
        outs[idx][0] = (y + b[:, lo:hi]).astype(outs[idx].dtype)


def qkv_projection(x, w_qkv, b_qkv, *, seq_tile=512):
    B, S, H = x.shape
    tm = _pick_tile(S, seq_tile, align=16)
    grid = (B, S // tm)
    cd = x.dtype
    itm = jnp.dtype(cd).itemsize

    x_spec = pl.BlockSpec((1, tm, H), lambda b, i: (b, i, 0))
    o_spec = pl.BlockSpec((1, tm, H), lambda b, i: (b, i, 0))
    o_shape = jax.ShapeDtypeStruct((B, S, H), cd)

    # Conservative (double-buffered weight) VMEM estimate for the limit.
    vmem = (2 * tm * H * itm + 2 * H * 3 * H * itm + 2 * 3 * H * 4
            + 3 * 2 * tm * H * itm + tm * H * 4)
    cost = _cost_estimate(
        flops=2 * B * S * H * 3 * H, transcendentals=0,
        bytes_accessed=B * S * H * itm + H * 3 * H * itm + 3 * H * 4
        + 3 * B * S * H * itm)

    def build(single_buffer_weight):
        if single_buffer_weight:
            # Grid-invariant operands: no point double-buffering them.
            w_spec = pl.BlockSpec((H, 3 * H), lambda b, i: (0, 0),
                                  pipeline_mode=pl.Buffered(1))
            b_spec = pl.BlockSpec((1, 3 * H), lambda b, i: (0, 0),
                                  pipeline_mode=pl.Buffered(1))
        else:
            w_spec = pl.BlockSpec((H, 3 * H), lambda b, i: (0, 0))
            b_spec = pl.BlockSpec((1, 3 * H), lambda b, i: (0, 0))
        return pl.pallas_call(
            functools.partial(_qkv_proj_kernel, hidden=H),
            grid=grid,
            in_specs=[x_spec, w_spec, b_spec],
            out_specs=(o_spec, o_spec, o_spec),
            out_shape=(o_shape, o_shape, o_shape),
            compiler_params=_compiler_params(("parallel", "parallel"), vmem),
            cost_estimate=cost,
        )

    try:
        return build(True)(x, w_qkv, b_qkv)
    except Exception:
        # TODO(synk): pl.Buffered(1) single-buffering unavailable on this JAX
        # version; fall back to default double-buffered grid-invariant weight.
        return build(False)(x, w_qkv, b_qkv)


# -----------------------------------------------------------------------------
# Kernel 2: attention over a (batch, head-group, q-tile) grid.  q/k/v arrive as
# [B, S, H] column slabs (g packed heads).  Softmax max/exp/sum stay f32;
# normalization is deferred past the PV matmul (no-probs path); per-head
# context is accumulated in a [tq, g*dH] f32 scratch and stored lane-dense.
# -----------------------------------------------------------------------------
def _attn_kernel(q_ref, k_ref, v_ref, mask_ref, ctx_ref, acc_ref, *,
                 head_size, heads):
    q = q_ref[0]            # [tq, hb]  (scale already folded into weights)
    k = k_ref[0]            # [S, hb]
    v = v_ref[0]            # [S, hb]
    mask = mask_ref[0]      # [1, S]
    for h in range(heads):  # static unrolled per-head loop
        lo, hi = h * head_size, (h + 1) * head_size
        # contract dim 1 of both operands -> MXU consumes K with no transpose
        scores = lax.dot_general(q[:, lo:hi], k[:, lo:hi],
                                 (((1,), (1,)), ((), ())),
                                 preferred_element_type=jnp.float32)  # [tq, S]
        scores = scores + mask
        m = jnp.max(scores, axis=-1, keepdims=True)
        e = jnp.exp(scores - m)
        denom = jnp.sum(e, axis=-1, keepdims=True)
        # TODO(synk): attention_probs dropout is identity in eval mode; training
        # would need pltpu.prng_seed/prng_random_bits here.
        pv = jnp.dot(e.astype(v.dtype), v[:, lo:hi],
                     preferred_element_type=jnp.float32)              # [tq, dH]
        # deferred normalization: scale [tq,dH], not [tq,S]
        acc_ref[:, lo:hi] = pv * pl.reciprocal(denom, approx=True)
    ctx_ref[0] = acc_ref[...].astype(ctx_ref.dtype)


def _attn_kernel_with_probs(q_ref, k_ref, v_ref, mask_ref, ctx_ref, probs_ref,
                            acc_ref, *, head_size, heads):
    q = q_ref[0]
    k = k_ref[0]
    v = v_ref[0]
    mask = mask_ref[0]
    for h in range(heads):
        lo, hi = h * head_size, (h + 1) * head_size
        scores = lax.dot_general(q[:, lo:hi], k[:, lo:hi],
                                 (((1,), (1,)), ((), ())),
                                 preferred_element_type=jnp.float32)
        scores = scores + mask
        m = jnp.max(scores, axis=-1, keepdims=True)
        e = jnp.exp(scores - m)
        denom = jnp.sum(e, axis=-1, keepdims=True)
        probs = e / denom                       # exact f32 softmax (HF parity)
        probs_ref[0, h] = probs
        acc_ref[:, lo:hi] = jnp.dot(probs.astype(v.dtype), v[:, lo:hi],
                                    preferred_element_type=jnp.float32)
    ctx_ref[0] = acc_ref[...].astype(ctx_ref.dtype)


def _fit_q_tile(S, tq, g, hb, itm, out_itm, budget):
    """Shrink tq until the per-step VMEM estimate (incl. the statically
    unrolled per-head f32 score/exp intermediates) fits the budget."""
    def est(t):
        return (2 * t * hb * itm            # q tile (double buffered)
                + 2 * 2 * S * hb * itm      # k + v slabs (double buffered)
                + 2 * t * hb * out_itm      # ctx output tile (double buffered)
                + t * hb * 4                # f32 ctx scratch
                + 2 * g * t * S * 4)        # per-head f32 scores + exp
    while est(tq) > budget and tq > 16:
        nt = _pick_tile(S, max(tq // 2, 16), align=16)
        if nt >= tq:
            break
        tq = nt
    return tq


def multi_head_attention(q, k, v, mask, *, num_heads, head_size, out_dtype,
                         output_attentions=False, q_tile=512):
    B, S, H = q.shape
    g = _heads_per_block(num_heads, head_size)
    hb = g * head_size
    n_groups = num_heads // g
    itm = jnp.dtype(q.dtype).itemsize
    out_itm = jnp.dtype(out_dtype).itemsize

    tq = _pick_tile(S, q_tile, align=16)
    tq = _fit_q_tile(S, tq, g, hb, itm, out_itm, _vmem_ceiling())
    n_qt = S // tq
    # grid order: q-tiles innermost (marked "arbitrary") so the resident K/V
    # slab is not re-fetched per q tile and megacore splits on (batch, group).
    grid = (B, n_groups, n_qt)

    q_spec = pl.BlockSpec((1, tq, hb), lambda b, h, i: (b, i, h))
    kv_spec = pl.BlockSpec((1, S, hb), lambda b, h, i: (b, 0, h))
    mask_spec = pl.BlockSpec((1, 1, S), lambda b, h, i: (b, 0, 0))
    ctx_spec = pl.BlockSpec((1, tq, hb), lambda b, h, i: (b, i, h))
    ctx_shape = jax.ShapeDtypeStruct((B, S, H), out_dtype)

    vmem = (2 * tq * hb * itm + 2 * 2 * S * hb * itm + 2 * S * 4
            + 2 * tq * hb * out_itm + tq * hb * 4 + 2 * g * tq * S * 4)

    flops = 4 * B * num_heads * S * S * head_size
    transc = B * num_heads * S * S
    bytes_main = 3 * B * S * H * itm + B * S * H * out_itm + B * S * 4

    kwargs = dict(head_size=head_size, heads=g)
    scratch = [pltpu.VMEM((tq, hb), jnp.float32)]
    semantics = ("parallel", "parallel", "arbitrary")

    if not output_attentions:
        ctx = pl.pallas_call(
            functools.partial(_attn_kernel, **kwargs),
            grid=grid,
            in_specs=[q_spec, kv_spec, kv_spec, mask_spec],
            out_specs=ctx_spec,
            out_shape=ctx_shape,
            scratch_shapes=scratch,
            compiler_params=_compiler_params(semantics, vmem),
            cost_estimate=_cost_estimate(flops, transc, bytes_main),
        )(q, k, v, mask)
        return ctx, None

    # output_attentions path: exact f32 probabilities (rare / debug path).
    probs_spec = pl.BlockSpec((1, g, tq, S), lambda b, h, i: (b, h, i, 0))
    probs_shape = jax.ShapeDtypeStruct((B, num_heads, S, S), jnp.float32)
    vmem_p = vmem + 2 * g * tq * S * 4
    ctx, probs = pl.pallas_call(
        functools.partial(_attn_kernel_with_probs, **kwargs),
        grid=grid,
        in_specs=[q_spec, kv_spec, kv_spec, mask_spec],
        out_specs=(ctx_spec, probs_spec),
        out_shape=(ctx_shape, probs_shape),
        scratch_shapes=scratch,
        compiler_params=_compiler_params(semantics, vmem_p),
        cost_estimate=_cost_estimate(
            flops, transc, bytes_main + B * num_heads * S * S * 4),
    )(q, k, v, mask)
    return ctx, probs


# -----------------------------------------------------------------------------
# Module wrapper
# -----------------------------------------------------------------------------
class BertSelfAttentionPallas:
    def __init__(self, hidden_size, num_attention_heads, key,
                 compute_dtype=jnp.bfloat16):
        assert hidden_size % num_attention_heads == 0
        self.num_heads = num_attention_heads
        self.head_size = hidden_size // num_attention_heads
        self.hidden = hidden_size
        self.compute_dtype = compute_dtype
        ks = jax.random.split(key, 6)
        init = lambda k, shp: (0.02 * jax.random.normal(k, shp)).astype(jnp.float32)
        # f32 master weights, stored [in, out] so projection is x @ W + b
        # (== PyTorch x @ W.T + b).
        self.wq = init(ks[0], (hidden_size, hidden_size))
        self.wk = init(ks[1], (hidden_size, hidden_size))
        self.wv = init(ks[2], (hidden_size, hidden_size))
        self.bq = init(ks[3], (hidden_size,))
        self.bk = init(ks[4], (hidden_size,))
        self.bv = init(ks[5], (hidden_size,))
        # 1/sqrt(dH) folded into the Q columns in f32 BEFORE the bf16 cast:
        # removes the per-head runtime scaling and its bf16 rounding step.
        scale = 1.0 / math.sqrt(self.head_size)
        self.w_qkv = jnp.concatenate(
            [self.wq * scale, self.wk, self.wv], axis=1).astype(compute_dtype)
        self.b_qkv = jnp.concatenate(
            [self.bq * scale, self.bk, self.bv])[None, :].astype(jnp.float32)

    def __call__(self, hidden_states, attention_mask=None,
                 output_attentions=False):
        B, S, H = hidden_states.shape
        out_dtype = hidden_states.dtype
        if attention_mask is None:
            mask = jnp.zeros((B, 1, S), dtype=jnp.float32)
        else:
            am = jnp.asarray(attention_mask)
            if am.shape == (B, S):
                mask = am.astype(jnp.float32).reshape(B, 1, S)
            elif am.shape == (B, 1, 1, S):
                mask = am.astype(jnp.float32).reshape(B, 1, S)
            else:
                # TODO(synk): extended [B,1,S,S] (causal/decoder) additive masks
                raise ValueError(
                    f"unsupported attention_mask shape {am.shape}; "
                    "expected [B, S] or [B, 1, 1, S]")

        x = hidden_states.astype(self.compute_dtype)
        q, k, v = qkv_projection(x, self.w_qkv, self.b_qkv)
        ctx, probs = multi_head_attention(
            q, k, v, mask, num_heads=self.num_heads, head_size=self.head_size,
            out_dtype=out_dtype, output_attentions=output_attentions)
        return (ctx, probs) if output_attentions else (ctx,)


# -----------------------------------------------------------------------------
# Pure-JAX reference (f32 master weights, HF semantics)
# -----------------------------------------------------------------------------
def reference(module, x, mask):
    B, S, H = x.shape
    nH, dH = module.num_heads, module.head_size
    q = x @ module.wq + module.bq
    k = x @ module.wk + module.bk
    v = x @ module.wv + module.bv
    split = lambda t: t.reshape(B, S, nH, dH).transpose(0, 2, 1, 3)
    qh, kh, vh = split(q), split(k), split(v)
    scores = jnp.einsum("bhld,bhrd->bhlr", qh, kh) / math.sqrt(dH)
    scores = scores + mask[:, None, None, :]
    probs = jax.nn.softmax(scores, axis=-1)
    ctx = jnp.einsum("bhlr,bhrd->bhld", probs, vh)
    return ctx.transpose(0, 2, 1, 3).reshape(B, S, H)


if __name__ == "__main__":
    key = jax.random.PRNGKey(0)
    k_param, k_x, k_mask = jax.random.split(key, 3)

    B, S, H, nH = 2, 8, 32, 4
    module = BertSelfAttentionPallas(hidden_size=H, num_attention_heads=nH,
                                     key=k_param)

    x = jax.random.normal(k_x, (B, S, H), dtype=jnp.float32)
    # additive attention mask: 0 for kept positions, -10000 for masked ones
    keep = (jax.random.uniform(k_mask, (B, S)) > 0.1).astype(jnp.float32)
    mask = (1.0 - keep) * -10000.0

    (ctx,) = module(x, attention_mask=mask)
    ctx = jax.block_until_ready(ctx)

    ref = reference(module, x, mask)
    assert ctx.shape == (B, S, H)
    # bf16 MXU operands (f32 accumulation) + approx reciprocal -> loose tol.
    assert jnp.allclose(ctx, ref, atol=2e-2, rtol=2e-2), "ctx mismatch vs reference"

    # output_attentions=True path (exact f32 probabilities)
    ctx2, probs = module(x, attention_mask=mask, output_attentions=True)
    ctx2, probs = jax.block_until_ready((ctx2, probs))
    assert probs.shape == (B, nH, S, S)
    row_sums = jnp.sum(probs, axis=-1)
    assert jnp.allclose(row_sums, 1.0, atol=1e-3), "probs rows do not sum to 1"
    assert jnp.allclose(ctx2, ref, atol=2e-2, rtol=2e-2), "ctx mismatch (probs path)"

    # BERT-style [B, 1, 1, S] extended-mask input path
    (ctx3,) = module(x, attention_mask=mask.reshape(B, 1, 1, S))
    ctx3 = jax.block_until_ready(ctx3)
    assert jnp.allclose(ctx3, ref, atol=2e-2, rtol=2e-2), "ctx mismatch (4D mask)"

    print("KERNEL_OK")
</pallas_src>

<mosaic_0001>
module attributes {stable_mosaic.version = 11 : i64} {
  func.func @_qkv_proj_kernel(%arg0: i32, %arg1: i32, %arg2: memref<1x8x32xbf16, #tpu.memory_space<vmem>>, %arg3: memref<32x96xbf16, #tpu.memory_space<vmem>>, %arg4: memref<1x96xf32, #tpu.memory_space<vmem>>, %arg5: memref<1x8x32xbf16, #tpu.memory_space<vmem>>, %arg6: memref<1x8x32xbf16, #tpu.memory_space<vmem>>, %arg7: memref<1x8x32xbf16, #tpu.memory_space<vmem>>) attributes {dimension_semantics = [#tpu.dimension_semantics<parallel>, #tpu.dimension_semantics<parallel>], iteration_bounds = array<i64: 2, 1>, scalar_prefetch = 0 : i64, scratch_operands = 0 : i64, tpu.core_type = #tpu.core_type<tc>, window_params = [{transform_indices = @transform_0, window_bounds = array<i64: 1, 8, 32>}, {pipeline_mode = #tpu.pipeline_mode<synchronous>, transform_indices = @transform_1, window_bounds = array<i64: 32, 96>}, {pipeline_mode = #tpu.pipeline_mode<synchronous>, transform_indices = @transform_2, window_bounds = array<i64: 1, 96>}, {transform_indices = @transform_3, window_bounds = array<i64: 1, 8, 32>}, {transform_indices = @transform_4, window_bounds = array<i64: 1, 8, 32>}, {transform_indices = @transform_5, window_bounds = array<i64: 1, 8, 32>}]} {
    %c0 = arith.constant 0 : index
    %c0_0 = arith.constant 0 : index
    %c0_1 = arith.constant 0 : index
    %0 = vector.load %arg2[%c0, %c0_0, %c0_1] : memref<1x8x32xbf16, #tpu.memory_space<vmem>>, vector<1x8x32xbf16>
    %1 = vector.shape_cast %0 : vector<1x8x32xbf16> to vector<8x32xbf16>
    %c0_2 = arith.constant 0 : index
    %c0_3 = arith.constant 0 : index
    %2 = vector.load %arg4[%c0_2, %c0_3] : memref<1x96xf32, #tpu.memory_space<vmem>>, vector<1x96xf32>
    %c0_4 = arith.constant 0 : index
    %c0_5 = arith.constant 0 : index
    %3 = vector.load %arg3[%c0_4, %c0_5] : memref<32x96xbf16, #tpu.memory_space<vmem>>, vector<32x32xbf16>
    %cst = arith.constant dense<0.000000e+00> : vector<8x32xf32>
    %4 = tpu.matmul %1, %3, %cst {dimension_numbers = #tpu.dot_dimension_numbers<[1], [0], [0], [1], [0, 0, 1, 1], [], []>} : vector<8x32xbf16>, vector<32x32xbf16>, vector<8x32xf32> -> vector<8x32xf32>
    %5 = vector.extract_strided_slice %2 {offsets = [0, 0], sizes = [1, 32], strides = [1, 1]} : vector<1x96xf32> to vector<1x32xf32>
    %6 = vector.broadcast %5 : vector<1x32xf32> to vector<8x32xf32>
    %7 = arith.addf %4, %6 : vector<8x32xf32>
    %8 = arith.truncf %7 : vector<8x32xf32> to vector<8x32xbf16>
    %c0_6 = arith.constant 0 : index
    %c0_7 = arith.constant 0 : index
    %c0_8 = arith.constant 0 : index
    %9 = vector.load %arg5[%c0_6, %c0_7, %c0_8] : memref<1x8x32xbf16, #tpu.memory_space<vmem>>, vector<1x8x32xbf16>
    %10 = vector.shape_cast %9 : vector<1x8x32xbf16> to vector<8x32xbf16>
    %11 = vector.shape_cast %8 : vector<8x32xbf16> to vector<1x8x32xbf16>
    tpu.vector_store %arg5[%c0_6, %c0_7, %c0_8], %11 {strides = array<i32>} : memref<1x8x32xbf16, #tpu.memory_space<vmem>>, vector<1x8x32xbf16>,
    %c0_9 = arith.constant 0 : index
    %c32 = arith.constant 32 : index
    %12 = vector.load %arg3[%c0_9, %c32] : memref<32x96xbf16, #tpu.memory_space<vmem>>, vector<32x32xbf16>
    %cst_10 = arith.constant dense<0.000000e+00> : vector<8x32xf32>
    %13 = tpu.matmul %1, %12, %cst_10 {dimension_numbers = #tpu.dot_dimension_numbers<[1], [0], [0], [1], [0, 0, 1, 1], [], []>} : vector<8x32xbf16>, vector<32x32xbf16>, vector<8x32xf32> -> vector<8x32xf32>
    %14 = vector.extract_strided_slice %2 {offsets = [0, 32], sizes = [1, 32], strides = [1, 1]} : vector<1x96xf32> to vector<1x32xf32>
    %15 = vector.broadcast %14 : vector<1x32xf32> to vector<8x32xf32>
    %16 = arith.addf %13, %15 : vector<8x32xf32>
    %17 = arith.truncf %16 : vector<8x32xf32> to vector<8x32xbf16>
    %c0_11 = arith.constant 0 : index
    %c0_12 = arith.constant 0 : index
    %c0_13 = arith.constant 0 : index
    %18 = vector.load %arg6[%c0_11, %c0_12, %c0_13] : memref<1x8x32xbf16, #tpu.memory_space<vmem>>, vector<1x8x32xbf16>
    %19 = vector.shape_cast %18 : vector<1x8x32xbf16> to vector<8x32xbf16>
    %20 = vector.shape_cast %17 : vector<8x32xbf16> to vector<1x8x32xbf16>
    tpu.vector_store %arg6[%c0_11, %c0_12, %c0_13], %20 {strides = array<i32>} : memref<1x8x32xbf16, #tpu.memory_space<vmem>>, vector<1x8x32xbf16>,
    %c0_14 = arith.constant 0 : index
    %c64 = arith.constant 64 : index
    %21 = vector.load %arg3[%c0_14, %c64] : memref<32x96xbf16, #tpu.memory_space<vmem>>, vector<32x32xbf16>
    %cst_15 = arith.constant dense<0.000000e+00> : vector<8x32xf32>
    %22 = tpu.matmul %1, %21, %cst_15 {dimension_numbers = #tpu.dot_dimension_numbers<[1], [0], [0], [1], [0, 0, 1, 1], [], []>} : vector<8x32xbf16>, vector<32x32xbf16>, vector<8x32xf32> -> vector<8x32xf32>
    %23 = vector.extract_strided_slice %2 {offsets = [0, 64], sizes = [1, 32], strides = [1, 1]} : vector<1x96xf32> to vector<1x32xf32>
    %24 = vector.broadcast %23 : vector<1x32xf32> to vector<8x32xf32>
    %25 = arith.addf %22, %24 : vector<8x32xf32>
    %26 = arith.truncf %25 : vector<8x32xf32> to vector<8x32xbf16>
    %c0_16 = arith.constant 0 : index
    %c0_17 = arith.constant 0 : index
    %c0_18 = arith.constant 0 : index
    %27 = vector.load %arg7[%c0_16, %c0_17, %c0_18] : memref<1x8x32xbf16, #tpu.memory_space<vmem>>, vector<1x8x32xbf16>
    %28 = vector.shape_cast %27 : vector<1x8x32xbf16> to vector<8x32xbf16>
    %29 = vector.shape_cast %26 : vector<8x32xbf16> to vector<1x8x32xbf16>
    tpu.vector_store %arg7[%c0_16, %c0_17, %c0_18], %29 {strides = array<i32>} : memref<1x8x32xbf16, #tpu.memory_space<vmem>>, vector<1x8x32xbf16>,
    return
  }
  func.func @transform_0(%arg0: i32, %arg1: i32) -> (i32, i32, i32) {
    %c0_i32 = arith.constant 0 : i32
    %c0_i32_0 = arith.constant 0 : i32
    return %arg0, %arg1, %c0_i32 : i32, i32, i32
  }
  func.func @transform_1(%arg0: i32, %arg1: i32) -> (i32, i32) {
    %c0_i32 = arith.constant 0 : i32
    %c0_i32_0 = arith.constant 0 : i32
    %c0_i32_1 = arith.constant 0 : i32
    return %c0_i32, %c0_i32_0 : i32, i32
  }
  func.func @transform_2(%arg0: i32, %arg1: i32) -> (i32, i32) {
    %c0_i32 = arith.constant 0 : i32
    %c0_i32_0 = arith.constant 0 : i32
    %c0_i32_1 = arith.constant 0 : i32
    return %c0_i32, %c0_i32_0 : i32, i32
  }
  func.func @transform_3(%arg0: i32, %arg1: i32) -> (i32, i32, i32) {
    %c0_i32 = arith.constant 0 : i32
    %c0_i32_0 = arith.constant 0 : i32
    return %arg0, %arg1, %c0_i32 : i32, i32, i32
  }
  func.func @transform_4(%arg0: i32, %arg1: i32) -> (i32, i32, i32) {
    %c0_i32 = arith.constant 0 : i32
    %c0_i32_0 = arith.constant 0 : i32
    return %arg0, %arg1, %c0_i32 : i32, i32, i32
  }
  func.func @transform_5(%arg0: i32, %arg1: i32) -> (i32, i32, i32) {
    %c0_i32 = arith.constant 0 : i32
    %c0_i32_0 = arith.constant 0 : i32
    return %arg0, %arg1, %c0_i32 : i32, i32, i32
  }
}

module attributes {stable_mosaic.version = 11 : i64} {
  func.func @_qkv_proj_kernel(%arg0: i32, %arg1: i32, %arg2: memref<1x8x32xbf16, #tpu.memory_space<vmem>>, %arg3: memref<32x96xbf16, #tpu.memory_space<vmem>>, %arg4: memref<1x96xf32, #tpu.memory_space<vmem>>, %arg5: memref<1x8x32xbf16, #tpu.memory_space<vmem>>, %arg6: memref<1x8x32xbf16, #tpu.memory_space<vmem>>, %arg7: memref<1x8x32xbf16, #tpu.memory_space<vmem>>) attributes {dimension_semantics = [#tpu.dimension_semantics<parallel>, #tpu.dimension_semantics<parallel>], iteration_bounds = array<i64: 2, 1>, scalar_prefetch = 0 : i64, scratch_operands = 0 : i64, tpu.core_type = #tpu.core_type<tc>, window_params = [{transform_indices = @transform_0, window_bounds = array<i64: 1, 8, 32>}, {pipeline_mode = #tpu.pipeline_mode<synchronous>, transform_indices = @transform_1, window_bounds = array<i64: 32, 96>}, {pipeline_mode = #tpu.pipeline_mode<synchronous>, transform_indices = @transform_2, window_bounds = array<i64: 1, 96>}, {transform_indices = @transform_3, window_bounds = array<i64: 1, 8, 32>}, {transform_indices = @transform_4, window_bounds = array<i64: 1, 8, 32>}, {transform_indices = @transform_5, window_bounds = array<i64: 1, 8, 32>}]} {
    %c0 = arith.constant 0 : index
    %c0_0 = arith.constant 0 : index
    %c0_1 = arith.constant 0 : index
    %0 = vector.load %arg2[%c0, %c0_0, %c0_1] : memref<1x8x32xbf16, #tpu.memory_space<vmem>>, vector<1x8x32xbf16>
    %1 = vector.shape_cast %0 : vector<1x8x32xbf16> to vector<8x32xbf16>
    %c0_2 = arith.constant 0 : index
    %c0_3 = arith.constant 0 : index
    %2 = vector.load %arg4[%c0_2, %c0_3] : memref<1x96xf32, #tpu.memory_space<vmem>>, vector<1x96xf32>
    %c0_4 = arith.constant 0 : index
    %c0_5 = arith.constant 0 : index
    %3 = vector.load %arg3[%c0_4, %c0_5] : memref<32x96xbf16, #tpu.memory_space<vmem>>, vector<32x32xbf16>
    %cst = arith.constant dense<0.000000e+00> : vector<8x32xf32>
    %4 = tpu.matmul %1, %3, %cst {dimension_numbers = #tpu.dot_dimension_numbers<[1], [0], [0], [1], [0, 0, 1, 1], [], []>} : vector<8x32xbf16>, vector<32x32xbf16>, vector<8x32xf32> -> vector<8x32xf32>
    %5 = vector.extract_strided_slice %2 {offsets = [0, 0], sizes = [1, 32], strides = [1, 1]} : vector<1x96xf32> to vector<1x32xf32>
    %6 = vector.broadcast %5 : vector<1x32xf32> to vector<8x32xf32>
    %7 = arith.addf %4, %6 : vector<8x32xf32>
    %8 = arith.truncf %7 : vector<8x32xf32> to vector<8x32xbf16>
    %c0_6 = arith.constant 0 : index
    %c0_7 = arith.constant 0 : index
    %c0_8 = arith.constant 0 : index
    %9 = vector.load %arg5[%c0_6, %c0_7, %c0_8] : memref<1x8x32xbf16, #tpu.memory_space<vmem>>, vector<1x8x32xbf16>
    %10 = vector.shape_cast %9 : vector<1x8x32xbf16> to vector<8x32xbf16>
    %11 = vector.shape_cast %8 : vector<8x32xbf16> to vector<1x8x32xbf16>
    tpu.vector_store %arg5[%c0_6, %c0_7, %c0_8], %11 {strides = array<i32>} : memref<1x8x32xbf16, #tpu.memory_space<vmem>>, vector<1x8x32xbf16>,
    %c0_9 = arith.constant 0 : index
    %c32 = arith.constant 32 : index
    %12 = vector.load %arg3[%c0_9, %c32] : memref<32x96xbf16, #tpu.memory_space<vmem>>, vector<32x32xbf16>
    %cst_10 = arith.constant dense<0.000000e+00> : vector<8x32xf32>
    %13 = tpu.matmul %1, %12, %cst_10 {dimension_numbers = #tpu.dot_dimension_numbers<[1], [0], [0], [1], [0, 0, 1, 1], [], []>} : vector<8x32xbf16>, vector<32x32xbf16>, vector<8x32xf32> -> vector<8x32xf32>
    %14 = vector.extract_strided_slice %2 {offsets = [0, 32], sizes = [1, 32], strides = [1, 1]} : vector<1x96xf32> to vector<1x32xf32>
    %15 = vector.broadcast %14 : vector<1x32xf32> to vector<8x32xf32>
    %16 = arith.addf %13, %15 : vector<8x32xf32>
    %17 = arith.truncf %16 : vector<8x32xf32> to vector<8x32xbf16>
    %c0_11 = arith.constant 0 : index
    %c0_12 = arith.constant 0 : index
    %c0_13 = arith.constant 0 : index
    %18 = vector.load %arg6[%c0_11, %c0_12, %c0_13] : memref<1x8x32xbf16, #tpu.memory_space<vmem>>, vector<1x8x32xbf16>
    %19 = vector.shape_cast %18 : vector<1x8x32xbf16> to vector<8x32xbf16>
    %20 = vector.shape_cast %17 : vector<8x32xbf16> to vector<1x8x32xbf16>
    tpu.vector_store %arg6[%c0_11, %c0_12, %c0_13], %20 {strides = array<i32>} : memref<1x8x32xbf16, #tpu.memory_space<vmem>>, vector<1x8x32xbf16>,
    %c0_14 = arith.constant 0 : index
    %c64 = arith.constant 64 : index
    %21 = vector.load %arg3[%c0_14, %c64] : memref<32x96xbf16, #tpu.memory_space<vmem>>, vector<32x32xbf16>
    %cst_15 = arith.constant dense<0.000000e+00> : vector<8x32xf32>
    %22 = tpu.matmul %1, %21, %cst_15 {dimension_numbers = #tpu.dot_dimension_numbers<[1], [0], [0], [1], [0, 0, 1, 1], [], []>} : vector<8x32xbf16>, vector<32x32xbf16>, vector<8x32xf32> -> vector<8x32xf32>
    %23 = vector.extract_strided_slice %2 {offsets = [0, 64], sizes = [1, 32], strides = [1, 1]} : vector<1x96xf32> to vector<1x32xf32>
    %24 = vector.broadcast %23 : vector<1x32xf32> to vector<8x32xf32>
    %25 = arith.addf %22, %24 : vector<8x32xf32>
    %26 = arith.truncf %25 : vector<8x32xf32> to vector<8x32xbf16>
    %c0_16 = arith.constant 0 : index
    %c0_17 = arith.constant 0 : index
    %c0_18 = arith.constant 0 : index
    %27 = vector.load %arg7[%c0_16, %c0_17, %c0_18] : memref<1x8x32xbf16, #tpu.memory_space<vmem>>, vector<1x8x32xbf16>
    %28 = vector.shape_cast %27 : vector<1x8x32xbf16> to vector<8x32xbf16>
    %29 = vector.shape_cast %26 : vector<8x32xbf16> to vector<1x8x32xbf16>
    tpu.vector_store %arg7[%c0_16, %c0_17, %c0_18], %29 {strides = array<i32>} : memref<1x8x32xbf16, #tpu.memory_space<vmem>>, vector<1x8x32xbf16>,
    return
  }
  func.func @transform_0(%arg0: i32, %arg1: i32) -> (i32, i32, i32) {
    %c0_i32 = arith.constant 0 : i32
    %c0_i32_0 = arith.constant 0 : i32
    return %arg0, %arg1, %c0_i32 : i32, i32, i32
  }
  func.func @transform_1(%arg0: i32, %arg1: i32) -> (i32, i32) {
    %c0_i32 = arith.constant 0 : i32
    %c0_i32_0 = arith.constant 0 : i32
    %c0_i32_1 = arith.constant 0 : i32
    return %c0_i32, %c0_i32_0 : i32, i32
  }
  func.func @transform_2(%arg0: i32, %arg1: i32) -> (i32, i32) {
    %c0_i32 = arith.constant 0 : i32
    %c0_i32_0 = arith.constant 0 : i32
    %c0_i32_1 = arith.constant 0 : i32
    return %c0_i32, %c0_i32_0 : i32, i32
  }
  func.func @transform_3(%arg0: i32, %arg1: i32) -> (i32, i32, i32) {
    %c0_i32 = arith.constant 0 : i32
    %c0_i32_0 = arith.constant 0 : i32
    return %arg0, %arg1, %c0_i32 : i32, i32, i32
  }
  func.func @transform_4(%arg0: i32, %arg1: i32) -> (i32, i32, i32) {
    %c0_i32 = arith.constant 0 : i32
    %c0_i32_0 = arith.constant 0 : i32
    return %arg0, %arg1, %c0_i32 : i32, i32, i32
  }
  func.func @transform_5(%arg0: i32, %arg1: i32) -> (i32, i32, i32) {
    %c0_i32 = arith.constant 0 : i32
    %c0_i32_0 = arith.constant 0 : i32
    return %arg0, %arg1, %c0_i32 : i32, i32, i32
  }
}

</mosaic_0001>

<llo_original>
// kernel: tpu_custom_call.1
$region0: #{tpu_custom_call.1}
  #allocation0 [shape = 'u32[]', space=smem, size = 0x4, offset = 0x4, fixed_abs, tag = 'smem constant byte address 0x4 - core index']
  #allocation1 [shape = 'u32[144,128]{1,0:T(1,128)}', space=vmem, size = 0x12000, scoped, tag = 'internal scratch']
  %s0 = inlined_call_operand.hbm [shape: bf16[2,8,32], index: 0, kind: input, shape index: {}]
  %s1 = inlined_call_operand.hbm [shape: bf16[32,96], index: 1, kind: input, shape index: {}]
  %s2 = inlined_call_operand.vmem [shape: f32[1,96], index: 2, kind: input, shape index: {}]
  %s3 = inlined_call_operand.hbm [shape: bf16[2,8,32], index: 3, kind: output, shape index: {0}]
  %s4 = inlined_call_operand.hbm [shape: bf16[2,8,32], index: 4, kind: output, shape index: {1}]
  %s5 = inlined_call_operand.hbm [shape: bf16[2,8,32], index: 5, kind: output, shape index: {2}]
  %6 = xla_tuple %s3, %s4, %s5
  %s7 = sld [smem:[#allocation0]]
  $region69: #{tpu_custom_call.1} parent=0
    _
  %s9 = ssub.s32 1, %s7
  %s10 = scalar_select 0, %s9, %s7
  $region1: #{tpu_custom_call.1} parent=0
    #allocation2 [shape = 'u8[4096]{0}', space=vmem, size = 0x1000, scoped, tag = 'input window, operand 0']
    #allocation3 [shape = 's32[2]{0}', space=sflag, size = 0x8, scoped, tag = 'scoped memory for tpu_custom_call.1']
    #allocation4 [shape = 's32[2]{0}', space=sflag, size = 0x8, scoped, tag = 'scoped memory for tpu_custom_call.1']
    #allocation5 [shape = 'u8[8192]{0}', space=vmem, size = 0x2000, scoped, tag = 'input window, operand 1, single buffered']
    #allocation6 [shape = 's32[1]{0}', space=sflag, size = 0x4, scoped, tag = 'scoped memory for tpu_custom_call.1']
    #allocation7 [shape = 'u8[4096]{0}', space=vmem, size = 0x1000, scoped, tag = 'output window, operand 0']
    #allocation8 [shape = 'u8[4096]{0}', space=vmem, size = 0x1000, scoped, tag = 'output window, operand 1']
    #allocation9 [shape = 's32[2]{0}', space=sflag, size = 0x8, scoped, tag = 'scoped memory for tpu_custom_call.1']
    #allocation10 [shape = 'u8[4096]{0}', space=vmem, size = 0x1000, scoped, tag = 'output window, operand 2']
    %11 = vsyncpa [#allocation3], 0
    %s12 = scalar_lea.sflag [#allocation3], 1
    %13 = vsyncpa %s12, 0
    %14 = vsyncpa [#allocation6], 0
    %15 = vsyncpa [#allocation4], 0
    %s16 = scalar_lea.sflag [#allocation4], 1
    %17 = vsyncpa %s16, 0
    %18 = vsyncpa [#allocation9], 0
    %s19 = scalar_lea.sflag [#allocation9], 1
    %20 = vsyncpa %s19, 0
    loop: start=0, step=1, limit=4
    $region2: #{tpu_custom_call.1} parent=1 // loop_pre_header
      _
    $region3: #{tpu_custom_call.1} parent=1 // loop_header
      %s22 = sphi 0, %s26
      %p23 = scmp.ge.s32.totalorder %s22, 4
      %s29 = sphi 0, %s41
      %s30 = sphi 0, %s37
      %s31 = sphi 0, %s29
      %s32 = sphi 0, %s30
      %s33 = sphi 0, %s31
      %s34 = sphi 0, %s32
      %s46 = sphi 0, %s48
      %s49 = sphi 0, %s46
      %s50 = sphi 0, %s49
      %s66 = sphi 0, %s50
      %s70 = sphi 0, %s70
      %s72 = sphi 0, %s70
      %s73 = sphi 0, %s72
      %s87 = sphi 0, %s73
      %s91 = sphi 0, %s91
      %s93 = sphi 0, %s91
      %s94 = sphi 0, %s93
      %s108 = sphi 0, %s94
      %s116 = sphi 0, %s118
      %s119 = sphi 0, %s116
      %s120 = sphi 0, %s119
      %s136 = sphi 0, %s120
      %s144 = sphi 0, %s146
      %s147 = sphi 0, %s144
      %s148 = sphi 0, %s147
      %s164 = sphi 0, %s148
      %s172 = sphi 0, %s174
      %s175 = sphi 0, %s172
      %s176 = sphi 0, %s175
      %s192 = sphi 0, %s176
    $region4: #{tpu_custom_call.1} parent=1 // loop_header_branch
      %25 = sbr.rel (%p23) target = $region8
    $region5: #{tpu_custom_call.1} parent=1 // loop_body
      %s27 = ssub.s32 %s22, 1
      %s28 = ssub.s32 %s22, 2
      %s35 = sadd.s32 1, %s30
      %p36 = scmp.ge.s32.totalorder %s35, 1
      %s37 = scalar_select %p36, 0, %s35
      %s38 = sadd.s32 1, %s29
      %s39 = scalar_select %p36, %s38, %s29
      %p40 = scmp.ge.s32.totalorder %s39, 2
      %s41 = scalar_select %p40, 0, %s39
      %s42 = ssub.s32 %s29, %s41
      %s43 = ssub.s32 %s30, %s37
      %s44 = sor.u32 %s42, %s43
      %p45 = scmp.eq.s32.totalorder %s44, 0
      %s47 = sadd.s32 %s46, 1
      %s48 = scalar_select %p45, %s46, %s47
      %p51 = pneg %p45
      %p52 = scmp.eq.s32.totalorder %s22, 1
      %p53 = por %p51, %p52
      %p54 = scmp.ne.s32.totalorder %s46, %s49
      %p55 = scmp.eq.s32.totalorder %s22, 0
      %p56 = por %p54, %p55
      %p57 = scmp.ne.s32.totalorder %s46, %s49
      %p58 = scmp.eq.s32.totalorder %s27, 1
      %p59 = por %p57, %p58
      %p60 = scmp.ne.s32.totalorder %s49, %s50
      %p61 = scmp.eq.s32.totalorder %s27, 0
      %p62 = por %p60, %p61
      %p63 = scmp.ne.s32.totalorder %s49, %s50
      %p64 = scmp.eq.s32.totalorder %s28, 1
      %p65 = por %p63, %p64
      %p67 = scmp.ne.s32.totalorder %s50, %s66
      %p68 = scmp.eq.s32.totalorder %s28, 0
      %p69 = por %p67, %p68
      %s71 = sadd.s32 %s70, 1
      %p74 = scmp.eq.s32.totalorder %s22, 1
      %p75 = scmp.ne.s32.totalorder %s70, %s72
      %p76 = scmp.eq.s32.totalorder %s22, 0
      %p77 = por %p75, %p76
      %p78 = scmp.ne.s32.totalorder %s70, %s72
      %p79 = scmp.eq.s32.totalorder %s27, 1
      %p80 = por %p78, %p79
      %p81 = scmp.ne.s32.totalorder %s72, %s73
      %p82 = scmp.eq.s32.totalorder %s27, 0
      %p83 = por %p81, %p82
      %p84 = scmp.ne.s32.totalorder %s72, %s73
      %p85 = scmp.eq.s32.totalorder %s28, 1
      %p86 = por %p84, %p85
      %p88 = scmp.ne.s32.totalorder %s73, %s87
      %p89 = scmp.eq.s32.totalorder %s28, 0
      %p90 = por %p88, %p89
      %s92 = sadd.s32 %s91, 1
      %p95 = scmp.eq.s32.totalorder %s22, 1
      %p96 = scmp.ne.s32.totalorder %s91, %s93
      %p97 = scmp.eq.s32.totalorder %s22, 0
      %p98 = por %p96, %p97
      %p99 = scmp.ne.s32.totalorder %s91, %s93
      %p100 = scmp.eq.s32.totalorder %s27, 1
      %p101 = por %p99, %p100
      %p102 = scmp.ne.s32.totalorder %s93, %s94
      %p103 = scmp.eq.s32.totalorder %s27, 0
      %p104 = por %p102, %p103
      %p105 = scmp.ne.s32.totalorder %s93, %s94
      %p106 = scmp.eq.s32.totalorder %s28, 1
      %p107 = por %p105, %p106
      %p109 = scmp.ne.s32.totalorder %s94, %s108
      %p110 = scmp.eq.s32.totalorder %s28, 0
      %p111 = por %p109, %p110
      %s112 = ssub.s32 %s29, %s41
      %s113 = ssub.s32 %s30, %s37
      %s114 = sor.u32 %s112, %s113
      %p115 = scmp.eq.s32.totalorder %s114, 0
      %s117 = sadd.s32 %s116, 1
      %s118 = scalar_select %p115, %s116, %s117
      %p121 = pneg %p115
      %p122 = scmp.eq.s32.totalorder %s22, 1
      %p123 = por %p121, %p122
      %p124 = scmp.ne.s32.totalorder %s116, %s119
      %p125 = scmp.eq.s32.totalorder %s22, 0
      %p126 = por %p124, %p125
      %p127 = scmp.ne.s32.totalorder %s116, %s119
      %p128 = scmp.eq.s32.totalorder %s27, 1
      %p129 = por %p127, %p128
      %p130 = scmp.ne.s32.totalorder %s119, %s120
      %p131 = scmp.eq.s32.totalorder %s27, 0
      %p132 = por %p130, %p131
      %p133 = scmp.ne.s32.totalorder %s119, %s120
      %p134 = scmp.eq.s32.totalorder %s28, 1
      %p135 = por %p133, %p134
      %p137 = scmp.ne.s32.totalorder %s120, %s136
      %p138 = scmp.eq.s32.totalorder %s28, 0
      %p139 = por %p137, %p138
      %s140 = ssub.s32 %s29, %s41
      %s141 = ssub.s32 %s30, %s37
      %s142 = sor.u32 %s140, %s141
      %p143 = scmp.eq.s32.totalorder %s142, 0
      %s145 = sadd.s32 %s144, 1
      %s146 = scalar_select %p143, %s144, %s145
      %p149 = pneg %p143
      %p150 = scmp.eq.s32.totalorder %s22, 1
      %p151 = por %p149, %p150
      %p152 = scmp.ne.s32.totalorder %s144, %s147
      %p153 = scmp.eq.s32.totalorder %s22, 0
      %p154 = por %p152, %p153
      %p155 = scmp.ne.s32.totalorder %s144, %s147
      %p156 = scmp.eq.s32.totalorder %s27, 1
      %p157 = por %p155, %p156
      %p158 = scmp.ne.s32.totalorder %s147, %s148
      %p159 = scmp.eq.s32.totalorder %s27, 0
      %p160 = por %p158, %p159
      %p161 = scmp.ne.s32.totalorder %s147, %s148
      %p162 = scmp.eq.s32.totalorder %s28, 1
      %p163 = por %p161, %p162
      %p165 = scmp.ne.s32.totalorder %s148, %s164
      %p166 = scmp.eq.s32.totalorder %s28, 0
      %p167 = por %p165, %p166
      %s168 = ssub.s32 %s29, %s41
      %s169 = ssub.s32 %s30, %s37
      %s170 = sor.u32 %s168, %s169
      %p171 = scmp.eq.s32.totalorder %s170, 0
      %s173 = sadd.s32 %s172, 1
      %s174 = scalar_select %p171, %s172, %s173
      %p177 = pneg %p171
      %p178 = scmp.eq.s32.totalorder %s22, 1
      %p179 = por %p177, %p178
      %p180 = scmp.ne.s32.totalorder %s172, %s175
      %p181 = scmp.eq.s32.totalorder %s22, 0
      %p182 = por %p180, %p181
      %p183 = scmp.ne.s32.totalorder %s172, %s175
      %p184 = scmp.eq.s32.totalorder %s27, 1
      %p185 = por %p183, %p184
      %p186 = scmp.ne.s32.totalorder %s175, %s176
      %p187 = scmp.eq.s32.totalorder %s27, 0
      %p188 = por %p186, %p187
      %p189 = scmp.ne.s32.totalorder %s175, %s176
      %p190 = scmp.eq.s32.totalorder %s28, 1
      %p191 = por %p189, %p190
      %p193 = scmp.ne.s32.totalorder %s176, %s192
      %p194 = scmp.eq.s32.totalorder %s28, 0
      %p195 = por %p193, %p194
      %p196 = scmp.le.s32.totalorder 1, %s22
      %p197 = scmp.lt.s32.totalorder %s22, 3
      %p198 = pnand %p196, %p197
      %p199 = pneg %p198
      // Predicated region
      $region9: #{tpu_custom_call.1} parent=5 // pred_check
        _
      $region10: #{tpu_custom_call.1} parent=5 // pred_check_branch
        %201 = sbr.rel (%p198) target = $region12
      $region11: #{tpu_custom_call.1} parent=5 // pred_region
        %s202 = ssub.s32 %s22, 1
        // Predicated region
        $region13: #{tpu_custom_call.1} parent=11 // pred_check
          %p203 = pneg %p83
        $region14: #{tpu_custom_call.1} parent=11 // pred_check_branch
          %205 = sbr.rel (%p203) target = $region16
        $region15: #{tpu_custom_call.1} parent=11 // pred_region
          %s207 = ssub.s32 256, 256
          %208 = vsyncadd [#allocation6], %s207
          %s209 = sshll.u32 [#allocation5], 4
          %s210 = int_to_ptr.vmem [resolvable:$true] %s209
          %215 = dma.hbm_to_vmem [thread:$0]  %s1, 256, %s210, [#allocation6], 64, 64, 4
        $region16: #{tpu_custom_call.1} parent=11 // pred_fallthru
          _
        // Predicated region
        $region17: #{tpu_custom_call.1} parent=11 // pred_check
          %p216 = pneg %p104
        $region18: #{tpu_custom_call.1} parent=11 // pred_check_branch
          %218 = sbr.rel (%p216) target = $region20
        $region19: #{tpu_custom_call.1} parent=11 // pred_region
          _
        $region20: #{tpu_custom_call.1} parent=11 // pred_fallthru
          _
      $region12: #{tpu_custom_call.1} parent=5 // pred_fallthru
        _
      %p219 = scmp.lt.s32.totalorder %s22, 2
      // Predicated region
      $region21: #{tpu_custom_call.1} parent=5 // pred_check
        %p220 = pneg %p219
      $region22: #{tpu_custom_call.1} parent=5 // pred_check_branch
        %222 = sbr.rel (%p220) target = $region24
      $region23: #{tpu_custom_call.1} parent=5 // pred_region
        // Predicated region
        $region25: #{tpu_custom_call.1} parent=23 // pred_check
          %p223 = pneg %p56
        $region26: #{tpu_custom_call.1} parent=23 // pred_check_branch
          %225 = sbr.rel (%p223) target = $region28
        $region27: #{tpu_custom_call.1} parent=23 // pred_region
          %s226 = sand.u32 %s46, 1
          %s227 = scalar_lea.sflag [#allocation3], %s226
          %s228 = sand.u32 %s46, 1
          %s229 = smul.addr %s228, 4
          %s230 = scalar_lea.vmem [#allocation2], %s229
          %s232 = ssub.s32 64, 64
          %233 = vsyncadd %s227, %s232
          %s234 = sadd.s32 %s30, %s29
          %s235 = smul.addr %s234, 64
          %s236 = scalar_lea.hbm %s0, %s235
          %s238 = sshll.u32 %s230, 4
          %s239 = int_to_ptr.vmem [resolvable:$true] %s238
          %241 = dma.hbm_to_vmem [thread:$0]  %s236, 64, %s239, %s227
        $region28: #{tpu_custom_call.1} parent=23 // pred_fallthru
          _
      $region24: #{tpu_custom_call.1} parent=5 // pred_fallthru
        _
      %p242 = scmp.le.s32.totalorder 1, %s22
      %p243 = scmp.lt.s32.totalorder %s22, 3
      %p244 = pnand %p242, %p243
      %p245 = pneg %p244
      // Predicated region
      $region29: #{tpu_custom_call.1} parent=5 // pred_check
        _
      $region30: #{tpu_custom_call.1} parent=5 // pred_check_branch
        %247 = sbr.rel (%p244) target = $region32
      $region31: #{tpu_custom_call.1} parent=5 // pred_region
        %s248 = ssub.s32 %s22, 1
        %s249 = sand.u32 %s49, 1
        %s250 = scalar_lea.sflag [#allocation3], %s249
        %s251 = sand.u32 %s49, 1
        %s252 = smul.addr %s251, 4
        %s253 = scalar_lea.vmem [#allocation2], %s252
        // Predicated region
        $region33: #{tpu_custom_call.1} parent=31 // pred_check
          %p254 = pneg %p62
        $region34: #{tpu_custom_call.1} parent=31 // pred_check_branch
          %256 = sbr.rel (%p254) target = $region36
        $region35: #{tpu_custom_call.1} parent=31 // pred_region
          %257 = dma.done %s250, 64
        $region36: #{tpu_custom_call.1} parent=31 // pred_fallthru
          _
        // Predicated region
        $region37: #{tpu_custom_call.1} parent=31 // pred_check
          %p258 = pneg %p83
        $region38: #{tpu_custom_call.1} parent=31 // pred_check_branch
          %260 = sbr.rel (%p258) target = $region40
        $region39: #{tpu_custom_call.1} parent=31 // pred_region
          %261 = dma.done [#allocation6], 256
        $region40: #{tpu_custom_call.1} parent=31 // pred_fallthru
          _
        %s262 = sand.u32 %s49, 1
        %s263 = scalar_lea.sflag [#allocation3], %s262
        %s264 = sand.u32 %s49, 1
        %s265 = smul.addr %s264, 4
        %s266 = scalar_lea.vmem [#allocation2], %s265
        %p267 = pneg %p62
        %p268 = pneg %p59
        %p269 = pneg %p83
        %p270 = pneg %p80
        %p271 = pneg %p104
        %p272 = pneg %p101
        %p273 = pneg %p132
        %p274 = pneg %p129
        %s275 = sand.u32 %s119, 1
        %s276 = scalar_lea.sflag [#allocation4], %s275
        %s277 = sand.u32 %s119, 1
        %s278 = smul.addr %s277, 4
        %s279 = scalar_lea.vmem [#allocation7], %s278
        %p280 = pneg %p160
        %p281 = pneg %p157
        %s282 = sand.u32 %s27, 1
        %s283 = scalar_lea.sflag [#allocation9], %s282
        %s284 = sand.u32 %s147, 1
        %s285 = smul.addr %s284, 4
        %s286 = scalar_lea.vmem [#allocation8], %s285
        %p287 = pneg %p188
        %p288 = pneg %p185
        %s289 = sand.u32 %s27, 1
        %s290 = scalar_lea.sflag [#allocation9], %s289
        %s291 = sand.u32 %s175, 1
        %s292 = smul.addr %s291, 4
        %s293 = scalar_lea.vmem [#allocation10], %s292
        %v295 = vld [vmem:[%s253] sm:$0xf]
        %v296 = vld [vmem:[%s2] sm:$0x1]
        %v297 = vld [vmem:[#allocation5] sm:$0xf]
        %v298 = vld [vmem:[#allocation5 + $0x4] sm:$0xf]
        %v299 = vld [vmem:[#allocation5 + $0x8] sm:$0xf]
        %v300 = vld [vmem:[#allocation5 + $0xc] sm:$0xf]
        %v302 = vlaneseq
        %v303 = vshrl.u32 %v302, 7
        %v304 = vsub.s32 0, %v303
        %v305 = vrot.slane %v296, %v304
        %v311 = vunpack.c.l.b16 %v297
        %v312 = vunpack.c.l.b16 %v298
        %v313 = vunpack.c.l.b16 %v299
        %v314 = vunpack.c.l.b16 %v300
        %v315 = vpack.c.b16 %v312, %v311
        %v316 = vpack.c.b16 %v314, %v313
        %vm319 = vcmask 261120
        %v321 = vsel %vm319, %v295, 0
        %323 = vmatprep.subr.bf16.mxu0 0
        %324 = vmatpush1.bf16.msra.mxu0 %v315
        %325 = vmatprep.subr.bf16.mxu0 0
        %326 = vmatpush1.bf16.msra.mxu0 %v316
        %327 = vmatprep.subr.bf16.mxu0 0
        %328 = vmatpush1.bf16.msra.mxu0 0
        %329 = vmatprep.subr.bf16.mxu0 0
        %330 = vmatpush1.bf16.msra.mxu0 0
        %331 = vmatprep.subr.bf16.mxu0 0
        %332 = vmatpush1.bf16.msra.mxu0 0
        %333 = vmatprep.subr.bf16.mxu0 0
        %334 = vmatpush1.bf16.msra.mxu0 0
        %335 = vmatprep.subr.bf16.mxu0 0
        %336 = vmatpush1.bf16.msra.mxu0 0
        %337 = vmatprep.subr.bf16.mxu0 0
        %338 = vmatpush1.bf16.msra.mxu0 0
        %339 = vmatprep.subr.bf16.mxu0 0
        %340 = vmatpush1.bf16.msra.mxu0 0
        %341 = vmatprep.subr.bf16.mxu0 0
        %342 = vmatpush1.bf16.msra.mxu0 0
        %343 = vmatprep.subr.bf16.mxu0 0
        %344 = vmatpush1.bf16.msra.mxu0 0
        %345 = vmatprep.subr.bf16.mxu0 0
        %346 = vmatpush1.bf16.msra.mxu0 0
        %347 = vmatprep.subr.bf16.mxu0 0
        %348 = vmatpush1.bf16.msra.mxu0 0
        %349 = vmatprep.subr.bf16.mxu0 0
        %350 = vmatpush1.bf16.msra.mxu0 0
        %351 = vmatprep.subr.bf16.mxu0 0
        %352 = vmatpush1.bf16.msra.mxu0 0
        %353 = vmatprep.subr.bf16.mxu0 0
        %354 = vmatpush1.bf16.msra.mxu0 0
        %355 = vmatprep.mubr.bf16.mxu0 0
        %356 = vmatmul.mubr.bf16.gmra.mrb[0].mxu0 %v321
        %v357 = vpop.f32.mrb[0].mxu0
        %v358 = vadd.f32 %v305, %v357
        %v359 = vpop.f32.mrb[0].mxu0
        %v360 = vpop.f32.mrb[0].mxu0
        %v361 = vpop.f32.mrb[0].mxu0
        %362 = vdwg.mxu0
        %v363 = vpack.c.bf16 %v358, %v358
        %vm364 = vcmask 257024
        %365 = vst.msk [vmem:[%s279] sm:$0xf] %vm364, %v363
        %v366 = vld [vmem:[#allocation5] sm:$0xf]
        %v367 = vld [vmem:[#allocation5 + $0x4] sm:$0xf]
        %v368 = vld [vmem:[#allocation5 + $0x8] sm:$0xf]
        %v369 = vld [vmem:[#allocation5 + $0xc] sm:$0xf]
        %v374 = vunpack.c.l.b16 %v366
        %v375 = vunpack.c.l.b16 %v367
        %v376 = vunpack.c.l.b16 %v368
        %v377 = vunpack.c.l.b16 %v369
        %v378 = vpack.c.b16 %v375, %v374
        %v379 = vpack.c.b16 %v377, %v376
        %380 = vrot.lane.b32.xlu0 %v378, 96
        %v381 = vpop.permute.xlu0 %380
        %382 = vrot.lane.b32.xlu0 %v379, 96
        %v383 = vpop.permute.xlu0 %382
        %386 = vrot.lane.b32.xlu0 %v305, 96
        %v387 = vpop.permute.xlu0 %386
        %389 = vmatprep.subr.bf16.mxu0 0
        %390 = vmatpush1.bf16.msra.mxu0 %v381
        %391 = vmatprep.subr.bf16.mxu0 0
        %392 = vmatpush1.bf16.msra.mxu0 %v383
        %393 = vmatprep.subr.bf16.mxu0 0
        %394 = vmatpush1.bf16.msra.mxu0 0
        %395 = vmatprep.subr.bf16.mxu0 0
        %396 = vmatpush1.bf16.msra.mxu0 0
        %397 = vmatprep.subr.bf16.mxu0 0
        %398 = vmatpush1.bf16.msra.mxu0 0
        %399 = vmatprep.subr.bf16.mxu0 0
        %400 = vmatpush1.bf16.msra.mxu0 0
        %401 = vmatprep.subr.bf16.mxu0 0
        %402 = vmatpush1.bf16.msra.mxu0 0
        %403 = vmatprep.subr.bf16.mxu0 0
        %404 = vmatpush1.bf16.msra.mxu0 0
        %405 = vmatprep.subr.bf16.mxu0 0
        %406 = vmatpush1.bf16.msra.mxu0 0
        %407 = vmatprep.subr.bf16.mxu0 0
        %408 = vmatpush1.bf16.msra.mxu0 0
        %409 = vmatprep.subr.bf16.mxu0 0
        %410 = vmatpush1.bf16.msra.mxu0 0
        %411 = vmatprep.subr.bf16.mxu0 0
        %412 = vmatpush1.bf16.msra.mxu0 0
        %413 = vmatprep.subr.bf16.mxu0 0
        %414 = vmatpush1.bf16.msra.mxu0 0
        %415 = vmatprep.subr.bf16.mxu0 0
        %416 = vmatpush1.bf16.msra.mxu0 0
        %417 = vmatprep.subr.bf16.mxu0 0
        %418 = vmatpush1.bf16.msra.mxu0 0
        %419 = vmatprep.subr.bf16.mxu0 0
        %420 = vmatpush1.bf16.msra.mxu0 0
        %421 = vmatprep.mubr.bf16.mxu0 0
        %422 = vmatmul.mubr.bf16.gmra.mrb[0].mxu0 %v321
        %v423 = vpop.f32.mrb[0].mxu0
        %v424 = vadd.f32 %v387, %v423
        %v425 = vpop.f32.mrb[0].mxu0
        %v426 = vpop.f32.mrb[0].mxu0
        %v427 = vpop.f32.mrb[0].mxu0
        %428 = vdwg.mxu0
        %v429 = vpack.c.bf16 %v424, %v424
        %430 = vst.msk [vmem:[%s286] sm:$0xf] %vm364, %v429
        %v431 = vld [vmem:[#allocation5] sm:$0xf]
        %v432 = vld [vmem:[#allocation5 + $0x4] sm:$0xf]
        %v433 = vld [vmem:[#allocation5 + $0x8] sm:$0xf]
        %v434 = vld [vmem:[#allocation5 + $0xc] sm:$0xf]
        %v439 = vunpack.c.l.b16 %v431
        %v440 = vunpack.c.l.b16 %v432
        %v441 = vunpack.c.l.b16 %v433
        %v442 = vunpack.c.l.b16 %v434
        %v443 = vpack.c.b16 %v440, %v439
        %v444 = vpack.c.b16 %v442, %v441
        %445 = vrot.lane.b32.xlu0 %v443, 64
        %v446 = vpop.permute.xlu0 %445
        %447 = vrot.lane.b32.xlu0 %v444, 64
        %v448 = vpop.permute.xlu0 %447
        %451 = vrot.lane.b32.xlu0 %v305, 64
        %v452 = vpop.permute.xlu0 %451
        %454 = vmatprep.subr.bf16.mxu0 0
        %455 = vmatpush1.bf16.msra.mxu0 %v446
        %456 = vmatprep.subr.bf16.mxu0 0
        %457 = vmatpush1.bf16.msra.mxu0 %v448
        %458 = vmatprep.subr.bf16.mxu0 0
        %459 = vmatpush1.bf16.msra.mxu0 0
        %460 = vmatprep.subr.bf16.mxu0 0
        %461 = vmatpush1.bf16.msra.mxu0 0
        %462 = vmatprep.subr.bf16.mxu0 0
        %463 = vmatpush1.bf16.msra.mxu0 0
        %464 = vmatprep.subr.bf16.mxu0 0
        %465 = vmatpush1.bf16.msra.mxu0 0
        %466 = vmatprep.subr.bf16.mxu0 0
        %467 = vmatpush1.bf16.msra.mxu0 0
        %468 = vmatprep.subr.bf16.mxu0 0
        %469 = vmatpush1.bf16.msra.mxu0 0
        %470 = vmatprep.subr.bf16.mxu0 0
        %471 = vmatpush1.bf16.msra.mxu0 0
        %472 = vmatprep.subr.bf16.mxu0 0
        %473 = vmatpush1.bf16.msra.mxu0 0
        %474 = vmatprep.subr.bf16.mxu0 0
        %475 = vmatpush1.bf16.msra.mxu0 0
        %476 = vmatprep.subr.bf16.mxu0 0
        %477 = vmatpush1.bf16.msra.mxu0 0
        %478 = vmatprep.subr.bf16.mxu0 0
        %479 = vmatpush1.bf16.msra.mxu0 0
        %480 = vmatprep.subr.bf16.mxu0 0
        %481 = vmatpush1.bf16.msra.mxu0 0
        %482 = vmatprep.subr.bf16.mxu0 0
        %483 = vmatpush1.bf16.msra.mxu0 0
        %484 = vmatprep.subr.bf16.mxu0 0
        %485 = vmatpush1.bf16.msra.mxu0 0
        %486 = vmatprep.mubr.bf16.mxu0 0
        %487 = vmatmul.mubr.bf16.gmra.mrb[0].mxu0 %v321
        %v488 = vpop.f32.mrb[0].mxu0
        %v489 = vadd.f32 %v452, %v488
        %v490 = vpop.f32.mrb[0].mxu0
        %v491 = vpop.f32.mrb[0].mxu0
        %v492 = vpop.f32.mrb[0].mxu0
        %493 = vdwg.mxu0
        %v494 = vpack.c.bf16 %v489, %v489
        %495 = vst.msk [vmem:[%s293] sm:$0xf] %vm364, %v494
        %s496 = sand.u32 %s119, 1
        %s497 = scalar_lea.sflag [#allocation4], %s496
        %s498 = sand.u32 %s119, 1
        %s499 = smul.addr %s498, 4
        %s500 = scalar_lea.vmem [#allocation7], %s499
        %s501 = sand.u32 %s27, 1
        %s502 = scalar_lea.sflag [#allocation9], %s501
        %s503 = sand.u32 %s147, 1
        %s504 = smul.addr %s503, 4
        %s505 = scalar_lea.vmem [#allocation8], %s504
        %s506 = sand.u32 %s27, 1
        %s507 = scalar_lea.sflag [#allocation9], %s506
        %s508 = sand.u32 %s175, 1
        %s509 = smul.addr %s508, 4
        %s510 = scalar_lea.vmem [#allocation10], %s509
        // Predicated region
        $region41: #{tpu_custom_call.1} parent=31 // pred_check
          %p511 = pneg %p129
        $region42: #{tpu_custom_call.1} parent=31 // pred_check_branch
          %513 = sbr.rel (%p511) target = $region44
        $region43: #{tpu_custom_call.1} parent=31 // pred_region
          %s515 = ssub.s32 64, 64
          %516 = vsyncadd %s497, %s515
          %s517 = sadd.s32 %s32, %s31
          %s518 = smul.addr %s517, 64
          %s519 = scalar_lea.hbm %s3, %s518
          %s521 = sshll.u32 %s500, 4
          %s522 = int_to_ptr.vmem [resolvable:$true] %s521
          %524 = dma.vmem_to_hbm [thread:$0]  %s522, 64, %s519, %s497
        $region44: #{tpu_custom_call.1} parent=31 // pred_fallthru
          _
        // Predicated region
        $region45: #{tpu_custom_call.1} parent=31 // pred_check
          %p525 = pneg %p157
        $region46: #{tpu_custom_call.1} parent=31 // pred_check_branch
          %527 = sbr.rel (%p525) target = $region48
        $region47: #{tpu_custom_call.1} parent=31 // pred_region
          %s529 = ssub.s32 64, 64
          %530 = vsyncadd %s502, %s529
          %s531 = sadd.s32 %s32, %s31
          %s532 = smul.addr %s531, 64
          %s533 = scalar_lea.hbm %s4, %s532
          %s535 = sshll.u32 %s505, 4
          %s536 = int_to_ptr.vmem [resolvable:$true] %s535
          %538 = dma.vmem_to_hbm [thread:$0]  %s536, 64, %s533, %s502
        $region48: #{tpu_custom_call.1} parent=31 // pred_fallthru
          _
        // Predicated region
        $region49: #{tpu_custom_call.1} parent=31 // pred_check
          %p539 = pneg %p185
        $region50: #{tpu_custom_call.1} parent=31 // pred_check_branch
          %541 = sbr.rel (%p539) target = $region52
        $region51: #{tpu_custom_call.1} parent=31 // pred_region
          %s543 = ssub.s32 64, 64
          %544 = vsyncadd %s507, %s543
          %s545 = sadd.s32 %s32, %s31
          %s546 = smul.addr %s545, 64
          %s547 = scalar_lea.hbm %s5, %s546
          %s549 = sshll.u32 %s510, 4
          %s550 = int_to_ptr.vmem [resolvable:$true] %s549
          %552 = dma.vmem_to_hbm [thread:$0]  %s550, 64, %s547, %s507
        $region52: #{tpu_custom_call.1} parent=31 // pred_fallthru
          _
      $region32: #{tpu_custom_call.1} parent=5 // pred_fallthru
        _
      %p553 = scmp.le.s32.totalorder 2, %s22
      // Predicated region
      $region53: #{tpu_custom_call.1} parent=5 // pred_check
        %p554 = pneg %p553
      $region54: #{tpu_custom_call.1} parent=5 // pred_check_branch
        %556 = sbr.rel (%p554) target = $region56
      $region55: #{tpu_custom_call.1} parent=5 // pred_region
        %s557 = ssub.s32 %s22, 2
        // Predicated region
        $region57: #{tpu_custom_call.1} parent=55 // pred_check
          %p558 = pneg %p135
        $region58: #{tpu_custom_call.1} parent=55 // pred_check_branch
          %560 = sbr.rel (%p558) target = $region60
        $region59: #{tpu_custom_call.1} parent=55 // pred_region
          %s561 = sand.u32 %s120, 1
          %s562 = scalar_lea.sflag [#allocation4], %s561
          %s563 = sand.u32 %s120, 1
          %s564 = smul.addr %s563, 4
          %s565 = scalar_lea.vmem [#allocation7], %s564
          %566 = dma.done %s562, 64
        $region60: #{tpu_custom_call.1} parent=55 // pred_fallthru
          _
        // Predicated region
        $region61: #{tpu_custom_call.1} parent=55 // pred_check
          %p567 = pneg %p163
        $region62: #{tpu_custom_call.1} parent=55 // pred_check_branch
          %569 = sbr.rel (%p567) target = $region64
        $region63: #{tpu_custom_call.1} parent=55 // pred_region
          %s570 = sand.u32 %s28, 1
          %s571 = scalar_lea.sflag [#allocation9], %s570
          %s572 = sand.u32 %s148, 1
          %s573 = smul.addr %s572, 4
          %s574 = scalar_lea.vmem [#allocation8], %s573
          %575 = dma.done %s571, 64
        $region64: #{tpu_custom_call.1} parent=55 // pred_fallthru
          _
        // Predicated region
        $region65: #{tpu_custom_call.1} parent=55 // pred_check
          %p576 = pneg %p191
        $region66: #{tpu_custom_call.1} parent=55 // pred_check_branch
          %578 = sbr.rel (%p576) target = $region68
        $region67: #{tpu_custom_call.1} parent=55 // pred_region
          %s579 = sand.u32 %s28, 1
          %s580 = scalar_lea.sflag [#allocation9], %s579
          %s581 = sand.u32 %s176, 1
          %s582 = smul.addr %s581, 4
          %s583 = scalar_lea.vmem [#allocation10], %s582
          %584 = dma.done %s580, 64
        $region68: #{tpu_custom_call.1} parent=55 // pred_fallthru
          _
      $region56: #{tpu_custom_call.1} parent=5 // pred_fallthru
        _
    $region6: #{tpu_custom_call.1} parent=1 // loop_footer
      %s26 = sadd.s32 1, %s22
    $region7: #{tpu_custom_call.1} parent=1 // loop_footer_branch
      %21 = sbr.rel target = $region3
    $region8: #{tpu_custom_call.1} parent=1 // loop_exit
      _
    %585 = vsyncpa [#allocation3], 1
    %s586 = scalar_lea.sflag [#allocation3], 1
    %587 = vsyncpa %s586, 1
    %588 = vsyncpa [#allocation6], 1
    %589 = vsyncpa [#allocation4], 1
    %s590 = scalar_lea.sflag [#allocation4], 1
    %591 = vsyncpa %s590, 1
    %592 = vsyncpa [#allocation9], 1
    %s593 = scalar_lea.sflag [#allocation9], 1
    %594 = vsyncpa %s593, 1

// kernel: tpu_custom_call.1
$region0: #{tpu_custom_call.1}
  #allocation0 [shape = 'u32[]', space=smem, size = 0x4, offset = 0x4, fixed_abs, tag = 'smem constant byte address 0x4 - core index']
  #allocation1 [shape = 'u32[144,128]{1,0:T(1,128)}', space=vmem, size = 0x12000, scoped, tag = 'internal scratch']
  %s0 = inlined_call_operand.hbm [shape: bf16[2,8,32], index: 0, kind: input, shape index: {}]
  %s1 = inlined_call_operand.hbm [shape: bf16[32,96], index: 1, kind: input, shape index: {}]
  %s2 = inlined_call_operand.vmem [shape: f32[1,96], index: 2, kind: input, shape index: {}]
  %s3 = inlined_call_operand.hbm [shape: bf16[2,8,32], index: 3, kind: output, shape index: {0}]
  %s4 = inlined_call_operand.hbm [shape: bf16[2,8,32], index: 4, kind: output, shape index: {1}]
  %s5 = inlined_call_operand.hbm [shape: bf16[2,8,32], index: 5, kind: output, shape index: {2}]
  %6 = xla_tuple %s3, %s4, %s5
  %s7 = sld [smem:[#allocation0]]
  $region69: #{tpu_custom_call.1} parent=0
    _
  %s9 = ssub.s32 1, %s7
  %s10 = scalar_select 0, %s9, %s7
  $region1: #{tpu_custom_call.1} parent=0
    #allocation2 [shape = 'u8[4096]{0}', space=vmem, size = 0x1000, scoped, tag = 'input window, operand 0']
    #allocation3 [shape = 's32[2]{0}', space=sflag, size = 0x8, scoped, tag = 'scoped memory for tpu_custom_call.1']
    #allocation4 [shape = 's32[2]{0}', space=sflag, size = 0x8, scoped, tag = 'scoped memory for tpu_custom_call.1']
    #allocation5 [shape = 'u8[8192]{0}', space=vmem, size = 0x2000, scoped, tag = 'input window, operand 1, single buffered']
    #allocation6 [shape = 's32[1]{0}', space=sflag, size = 0x4, scoped, tag = 'scoped memory for tpu_custom_call.1']
    #allocation7 [shape = 'u8[4096]{0}', space=vmem, size = 0x1000, scoped, tag = 'output window, operand 0']
    #allocation8 [shape = 'u8[4096]{0}', space=vmem, size = 0x1000, scoped, tag = 'output window, operand 1']
    #allocation9 [shape = 's32[2]{0}', space=sflag, size = 0x8, scoped, tag = 'scoped memory for tpu_custom_call.1']
    #allocation10 [shape = 'u8[4096]{0}', space=vmem, size = 0x1000, scoped, tag = 'output window, operand 2']
    %11 = vsyncpa [#allocation3], 0
    %s12 = scalar_lea.sflag [#allocation3], 1
    %13 = vsyncpa %s12, 0
    %14 = vsyncpa [#allocation6], 0
    %15 = vsyncpa [#allocation4], 0
    %s16 = scalar_lea.sflag [#allocation4], 1
    %17 = vsyncpa %s16, 0
    %18 = vsyncpa [#allocation9], 0
    %s19 = scalar_lea.sflag [#allocation9], 1
    %20 = vsyncpa %s19, 0
    loop: start=0, step=1, limit=4
    $region2: #{tpu_custom_call.1} parent=1 // loop_pre_header
      _
    $region3: #{tpu_custom_call.1} parent=1 // loop_header
      %s22 = sphi 0, %s26
      %p23 = scmp.ge.s32.totalorder %s22, 4
      %s29 = sphi 0, %s41
      %s30 = sphi 0, %s37
      %s31 = sphi 0, %s29
      %s32 = sphi 0, %s30
      %s33 = sphi 0, %s31
      %s34 = sphi 0, %s32
      %s46 = sphi 0, %s48
      %s49 = sphi 0, %s46
      %s50 = sphi 0, %s49
      %s66 = sphi 0, %s50
      %s70 = sphi 0, %s70
      %s72 = sphi 0, %s70
      %s73 = sphi 0, %s72
      %s87 = sphi 0, %s73
      %s91 = sphi 0, %s91
      %s93 = sphi 0, %s91
      %s94 = sphi 0, %s93
      %s108 = sphi 0, %s94
      %s116 = sphi 0, %s118
      %s119 = sphi 0, %s116
      %s120 = sphi 0, %s119
      %s136 = sphi 0, %s120
      %s144 = sphi 0, %s146
      %s147 = sphi 0, %s144
      %s148 = sphi 0, %s147
      %s164 = sphi 0, %s148
      %s172 = sphi 0, %s174
      %s175 = sphi 0, %s172
      %s176 = sphi 0, %s175
      %s192 = sphi 0, %s176
    $region4: #{tpu_custom_call.1} parent=1 // loop_header_branch
      %25 = sbr.rel (%p23) target = $region8
    $region5: #{tpu_custom_call.1} parent=1 // loop_body
      %s27 = ssub.s32 %s22, 1
      %s28 = ssub.s32 %s22, 2
      %s35 = sadd.s32 1, %s30
      %p36 = scmp.ge.s32.totalorder %s35, 1
      %s37 = scalar_select %p36, 0, %s35
      %s38 = sadd.s32 1, %s29
      %s39 = scalar_select %p36, %s38, %s29
      %p40 = scmp.ge.s32.totalorder %s39, 2
      %s41 = scalar_select %p40, 0, %s39
      %s42 = ssub.s32 %s29, %s41
      %s43 = ssub.s32 %s30, %s37
      %s44 = sor.u32 %s42, %s43
      %p45 = scmp.eq.s32.totalorder %s44, 0
      %s47 = sadd.s32 %s46, 1
      %s48 = scalar_select %p45, %s46, %s47
      %p51 = pneg %p45
      %p52 = scmp.eq.s32.totalorder %s22, 1
      %p53 = por %p51, %p52
      %p54 = scmp.ne.s32.totalorder %s46, %s49
      %p55 = scmp.eq.s32.totalorder %s22, 0
      %p56 = por %p54, %p55
      %p57 = scmp.ne.s32.totalorder %s46, %s49
      %p58 = scmp.eq.s32.totalorder %s27, 1
      %p59 = por %p57, %p58
      %p60 = scmp.ne.s32.totalorder %s49, %s50
      %p61 = scmp.eq.s32.totalorder %s27, 0
      %p62 = por %p60, %p61
      %p63 = scmp.ne.s32.totalorder %s49, %s50
      %p64 = scmp.eq.s32.totalorder %s28, 1
      %p65 = por %p63, %p64
      %p67 = scmp.ne.s32.totalorder %s50, %s66
      %p68 = scmp.eq.s32.totalorder %s28, 0
      %p69 = por %p67, %p68
      %s71 = sadd.s32 %s70, 1
      %p74 = scmp.eq.s32.totalorder %s22, 1
      %p75 = scmp.ne.s32.totalorder %s70, %s72
      %p76 = scmp.eq.s32.totalorder %s22, 0
      %p77 = por %p75, %p76
      %p78 = scmp.ne.s32.totalorder %s70, %s72
      %p79 = scmp.eq.s32.totalorder %s27, 1
      %p80 = por %p78, %p79
      %p81 = scmp.ne.s32.totalorder %s72, %s73
      %p82 = scmp.eq.s32.totalorder %s27, 0
      %p83 = por %p81, %p82
      %p84 = scmp.ne.s32.totalorder %s72, %s73
      %p85 = scmp.eq.s32.totalorder %s28, 1
      %p86 = por %p84, %p85
      %p88 = scmp.ne.s32.totalorder %s73, %s87
      %p89 = scmp.eq.s32.totalorder %s28, 0
      %p90 = por %p88, %p89
      %s92 = sadd.s32 %s91, 1
      %p95 = scmp.eq.s32.totalorder %s22, 1
      %p96 = scmp.ne.s32.totalorder %s91, %s93
      %p97 = scmp.eq.s32.totalorder %s22, 0
      %p98 = por %p96, %p97
      %p99 = scmp.ne.s32.totalorder %s91, %s93
      %p100 = scmp.eq.s32.totalorder %s27, 1
      %p101 = por %p99, %p100
      %p102 = scmp.ne.s32.totalorder %s93, %s94
      %p103 = scmp.eq.s32.totalorder %s27, 0
      %p104 = por %p102, %p103
      %p105 = scmp.ne.s32.totalorder %s93, %s94
      %p106 = scmp.eq.s32.totalorder %s28, 1
      %p107 = por %p105, %p106
      %p109 = scmp.ne.s32.totalorder %s94, %s108
      %p110 = scmp.eq.s32.totalorder %s28, 0
      %p111 = por %p109, %p110
      %s112 = ssub.s32 %s29, %s41
      %s113 = ssub.s32 %s30, %s37
      %s114 = sor.u32 %s112, %s113
      %p115 = scmp.eq.s32.totalorder %s114, 0
      %s117 = sadd.s32 %s116, 1
      %s118 = scalar_select %p115, %s116, %s117
      %p121 = pneg %p115
      %p122 = scmp.eq.s32.totalorder %s22, 1
      %p123 = por %p121, %p122
      %p124 = scmp.ne.s32.totalorder %s116, %s119
      %p125 = scmp.eq.s32.totalorder %s22, 0
      %p126 = por %p124, %p125
      %p127 = scmp.ne.s32.totalorder %s116, %s119
      %p128 = scmp.eq.s32.totalorder %s27, 1
      %p129 = por %p127, %p128
      %p130 = scmp.ne.s32.totalorder %s119, %s120
      %p131 = scmp.eq.s32.totalorder %s27, 0
      %p132 = por %p130, %p131
      %p133 = scmp.ne.s32.totalorder %s119, %s120
      %p134 = scmp.eq.s32.totalorder %s28, 1
      %p135 = por %p133, %p134
      %p137 = scmp.ne.s32.totalorder %s120, %s136
      %p138 = scmp.eq.s32.totalorder %s28, 0
      %p139 = por %p137, %p138
      %s140 = ssub.s32 %s29, %s41
      %s141 = ssub.s32 %s30, %s37
      %s142 = sor.u32 %s140, %s141
      %p143 = scmp.eq.s32.totalorder %s142, 0
      %s145 = sadd.s32 %s144, 1
      %s146 = scalar_select %p143, %s144, %s145
      %p149 = pneg %p143
      %p150 = scmp.eq.s32.totalorder %s22, 1
      %p151 = por %p149, %p150
      %p152 = scmp.ne.s32.totalorder %s144, %s147
      %p153 = scmp.eq.s32.totalorder %s22, 0
      %p154 = por %p152, %p153
      %p155 = scmp.ne.s32.totalorder %s144, %s147
      %p156 = scmp.eq.s32.totalorder %s27, 1
      %p157 = por %p155, %p156
      %p158 = scmp.ne.s32.totalorder %s147, %s148
      %p159 = scmp.eq.s32.totalorder %s27, 0
      %p160 = por %p158, %p159
      %p161 = scmp.ne.s32.totalorder %s147, %s148
      %p162 = scmp.eq.s32.totalorder %s28, 1
      %p163 = por %p161, %p162
      %p165 = scmp.ne.s32.totalorder %s148, %s164
      %p166 = scmp.eq.s32.totalorder %s28, 0
      %p167 = por %p165, %p166
      %s168 = ssub.s32 %s29, %s41
      %s169 = ssub.s32 %s30, %s37
      %s170 = sor.u32 %s168, %s169
      %p171 = scmp.eq.s32.totalorder %s170, 0
      %s173 = sadd.s32 %s172, 1
      %s174 = scalar_select %p171, %s172, %s173
      %p177 = pneg %p171
      %p178 = scmp.eq.s32.totalorder %s22, 1
      %p179 = por %p177, %p178
      %p180 = scmp.ne.s32.totalorder %s172, %s175
      %p181 = scmp.eq.s32.totalorder %s22, 0
      %p182 = por %p180, %p181
      %p183 = scmp.ne.s32.totalorder %s172, %s175
      %p184 = scmp.eq.s32.totalorder %s27, 1
      %p185 = por %p183, %p184
      %p186 = scmp.ne.s32.totalorder %s175, %s176
      %p187 = scmp.eq.s32.totalorder %s27, 0
      %p188 = por %p186, %p187
      %p189 = scmp.ne.s32.totalorder %s175, %s176
      %p190 = scmp.eq.s32.totalorder %s28, 1
      %p191 = por %p189, %p190
      %p193 = scmp.ne.s32.totalorder %s176, %s192
      %p194 = scmp.eq.s32.totalorder %s28, 0
      %p195 = por %p193, %p194
      %p196 = scmp.le.s32.totalorder 1, %s22
      %p197 = scmp.lt.s32.totalorder %s22, 3
      %p198 = pnand %p196, %p197
      %p199 = pneg %p198
      // Predicated region
      $region9: #{tpu_custom_call.1} parent=5 // pred_check
        _
      $region10: #{tpu_custom_call.1} parent=5 // pred_check_branch
        %201 = sbr.rel (%p198) target = $region12
      $region11: #{tpu_custom_call.1} parent=5 // pred_region
        %s202 = ssub.s32 %s22, 1
        // Predicated region
        $region13: #{tpu_custom_call.1} parent=11 // pred_check
          %p203 = pneg %p83
        $region14: #{tpu_custom_call.1} parent=11 // pred_check_branch
          %205 = sbr.rel (%p203) target = $region16
        $region15: #{tpu_custom_call.1} parent=11 // pred_region
          %s207 = ssub.s32 256, 256
          %208 = vsyncadd [#allocation6], %s207
          %s209 = sshll.u32 [#allocation5], 4
          %s210 = int_to_ptr.vmem [resolvable:$true] %s209
          %215 = dma.hbm_to_vmem [thread:$0]  %s1, 256, %s210, [#allocation6], 64, 64, 4
        $region16: #{tpu_custom_call.1} parent=11 // pred_fallthru
          _
        // Predicated region
        $region17: #{tpu_custom_call.1} parent=11 // pred_check
          %p216 = pneg %p104
        $region18: #{tpu_custom_call.1} parent=11 // pred_check_branch
          %218 = sbr.rel (%p216) target = $region20
        $region19: #{tpu_custom_call.1} parent=11 // pred_region
          _
        $region20: #{tpu_custom_call.1} parent=11 // pred_fallthru
          _
      $region12: #{tpu_custom_call.1} parent=5 // pred_fallthru
        _
      %p219 = scmp.lt.s32.totalorder %s22, 2
      // Predicated region
      $region21: #{tpu_custom_call.1} parent=5 // pred_check
        %p220 = pneg %p219
      $region22: #{tpu_custom_call.1} parent=5 // pred_check_branch
        %222 = sbr.rel (%p220) target = $region24
      $region23: #{tpu_custom_call.1} parent=5 // pred_region
        // Predicated region
        $region25: #{tpu_custom_call.1} parent=23 // pred_check
          %p223 = pneg %p56
        $region26: #{tpu_custom_call.1} parent=23 // pred_check_branch
          %225 = sbr.rel (%p223) target = $region28
        $region27: #{tpu_custom_call.1} parent=23 // pred_region
          %s226 = sand.u32 %s46, 1
          %s227 = scalar_lea.sflag [#allocation3], %s226
          %s228 = sand.u32 %s46, 1
          %s229 = smul.addr %s228, 4
          %s230 = scalar_lea.vmem [#allocation2], %s229
          %s232 = ssub.s32 64, 64
          %233 = vsyncadd %s227, %s232
          %s234 = sadd.s32 %s30, %s29
          %s235 = smul.addr %s234, 64
          %s236 = scalar_lea.hbm %s0, %s235
          %s238 = sshll.u32 %s230, 4
          %s239 = int_to_ptr.vmem [resolvable:$true] %s238
          %241 = dma.hbm_to_vmem [thread:$0]  %s236, 64, %s239, %s227
        $region28: #{tpu_custom_call.1} parent=23 // pred_fallthru
          _
      $region24: #{tpu_custom_call.1} parent=5 // pred_fallthru
        _
      %p242 = scmp.le.s32.totalorder 1, %s22
      %p243 = scmp.lt.s32.totalorder %s22, 3
      %p244 = pnand %p242, %p243
      %p245 = pneg %p244
      // Predicated region
      $region29: #{tpu_custom_call.1} parent=5 // pred_check
        _
      $region30: #{tpu_custom_call.1} parent=5 // pred_check_branch
        %247 = sbr.rel (%p244) target = $region32
      $region31: #{tpu_custom_call.1} parent=5 // pred_region
        %s248 = ssub.s32 %s22, 1
        %s249 = sand.u32 %s49, 1
        %s250 = scalar_lea.sflag [#allocation3], %s249
        %s251 = sand.u32 %s49, 1
        %s252 = smul.addr %s251, 4
        %s253 = scalar_lea.vmem [#allocation2], %s252
        // Predicated region
        $region33: #{tpu_custom_call.1} parent=31 // pred_check
          %p254 = pneg %p62
        $region34: #{tpu_custom_call.1} parent=31 // pred_check_branch
          %256 = sbr.rel (%p254) target = $region36
        $region35: #{tpu_custom_call.1} parent=31 // pred_region
          %257 = dma.done %s250, 64
        $region36: #{tpu_custom_call.1} parent=31 // pred_fallthru
          _
        // Predicated region
        $region37: #{tpu_custom_call.1} parent=31 // pred_check
          %p258 = pneg %p83
        $region38: #{tpu_custom_call.1} parent=31 // pred_check_branch
          %260 = sbr.rel (%p258) target = $region40
        $region39: #{tpu_custom_call.1} parent=31 // pred_region
          %261 = dma.done [#allocation6], 256
        $region40: #{tpu_custom_call.1} parent=31 // pred_fallthru
          _
        %s262 = sand.u32 %s49, 1
        %s263 = scalar_lea.sflag [#allocation3], %s262
        %s264 = sand.u32 %s49, 1
        %s265 = smul.addr %s264, 4
        %s266 = scalar_lea.vmem [#allocation2], %s265
        %p267 = pneg %p62
        %p268 = pneg %p59
        %p269 = pneg %p83
        %p270 = pneg %p80
        %p271 = pneg %p104
        %p272 = pneg %p101
        %p273 = pneg %p132
        %p274 = pneg %p129
        %s275 = sand.u32 %s119, 1
        %s276 = scalar_lea.sflag [#allocation4], %s275
        %s277 = sand.u32 %s119, 1
        %s278 = smul.addr %s277, 4
        %s279 = scalar_lea.vmem [#allocation7], %s278
        %p280 = pneg %p160
        %p281 = pneg %p157
        %s282 = sand.u32 %s27, 1
        %s283 = scalar_lea.sflag [#allocation9], %s282
        %s284 = sand.u32 %s147, 1
        %s285 = smul.addr %s284, 4
        %s286 = scalar_lea.vmem [#allocation8], %s285
        %p287 = pneg %p188
        %p288 = pneg %p185
        %s289 = sand.u32 %s27, 1
        %s290 = scalar_lea.sflag [#allocation9], %s289
        %s291 = sand.u32 %s175, 1
        %s292 = smul.addr %s291, 4
        %s293 = scalar_lea.vmem [#allocation10], %s292
        %v295 = vld [vmem:[%s253] sm:$0xf]
        %v296 = vld [vmem:[%s2] sm:$0x1]
        %v297 = vld [vmem:[#allocation5] sm:$0xf]
        %v298 = vld [vmem:[#allocation5 + $0x4] sm:$0xf]
        %v299 = vld [vmem:[#allocation5 + $0x8] sm:$0xf]
        %v300 = vld [vmem:[#allocation5 + $0xc] sm:$0xf]
        %v302 = vlaneseq
        %v303 = vshrl.u32 %v302, 7
        %v304 = vsub.s32 0, %v303
        %v305 = vrot.slane %v296, %v304
        %v311 = vunpack.c.l.b16 %v297
        %v312 = vunpack.c.l.b16 %v298
        %v313 = vunpack.c.l.b16 %v299
        %v314 = vunpack.c.l.b16 %v300
        %v315 = vpack.c.b16 %v312, %v311
        %v316 = vpack.c.b16 %v314, %v313
        %vm319 = vcmask 261120
        %v321 = vsel %vm319, %v295, 0
        %323 = vmatprep.subr.bf16.mxu0 0
        %324 = vmatpush1.bf16.msra.mxu0 %v315
        %325 = vmatprep.subr.bf16.mxu0 0
        %326 = vmatpush1.bf16.msra.mxu0 %v316
        %327 = vmatprep.subr.bf16.mxu0 0
        %328 = vmatpush1.bf16.msra.mxu0 0
        %329 = vmatprep.subr.bf16.mxu0 0
        %330 = vmatpush1.bf16.msra.mxu0 0
        %331 = vmatprep.subr.bf16.mxu0 0
        %332 = vmatpush1.bf16.msra.mxu0 0
        %333 = vmatprep.subr.bf16.mxu0 0
        %334 = vmatpush1.bf16.msra.mxu0 0
        %335 = vmatprep.subr.bf16.mxu0 0
        %336 = vmatpush1.bf16.msra.mxu0 0
        %337 = vmatprep.subr.bf16.mxu0 0
        %338 = vmatpush1.bf16.msra.mxu0 0
        %339 = vmatprep.subr.bf16.mxu0 0
        %340 = vmatpush1.bf16.msra.mxu0 0
        %341 = vmatprep.subr.bf16.mxu0 0
        %342 = vmatpush1.bf16.msra.mxu0 0
        %343 = vmatprep.subr.bf16.mxu0 0
        %344 = vmatpush1.bf16.msra.mxu0 0
        %345 = vmatprep.subr.bf16.mxu0 0
        %346 = vmatpush1.bf16.msra.mxu0 0
        %347 = vmatprep.subr.bf16.mxu0 0
        %348 = vmatpush1.bf16.msra.mxu0 0
        %349 = vmatprep.subr.bf16.mxu0 0
        %350 = vmatpush1.bf16.msra.mxu0 0
        %351 = vmatprep.subr.bf16.mxu0 0
        %352 = vmatpush1.bf16.msra.mxu0 0
        %353 = vmatprep.subr.bf16.mxu0 0
        %354 = vmatpush1.bf16.msra.mxu0 0
        %355 = vmatprep.mubr.bf16.mxu0 0
        %356 = vmatmul.mubr.bf16.gmra.mrb[0].mxu0 %v321
        %v357 = vpop.f32.mrb[0].mxu0
        %v358 = vadd.f32 %v305, %v357
        %v359 = vpop.f32.mrb[0].mxu0
        %v360 = vpop.f32.mrb[0].mxu0
        %v361 = vpop.f32.mrb[0].mxu0
        %362 = vdwg.mxu0
        %v363 = vpack.c.bf16 %v358, %v358
        %vm364 = vcmask 257024
        %365 = vst.msk [vmem:[%s279] sm:$0xf] %vm364, %v363
        %v366 = vld [vmem:[#allocation5] sm:$0xf]
        %v367 = vld [vmem:[#allocation5 + $0x4] sm:$0xf]
        %v368 = vld [vmem:[#allocation5 + $0x8] sm:$0xf]
        %v369 = vld [vmem:[#allocation5 + $0xc] sm:$0xf]
        %v374 = vunpack.c.l.b16 %v366
        %v375 = vunpack.c.l.b16 %v367
        %v376 = vunpack.c.l.b16 %v368
        %v377 = vunpack.c.l.b16 %v369
        %v378 = vpack.c.b16 %v375, %v374
        %v379 = vpack.c.b16 %v377, %v376
        %380 = vrot.lane.b32.xlu0 %v378, 96
        %v381 = vpop.permute.xlu0 %380
        %382 = vrot.lane.b32.xlu0 %v379, 96
        %v383 = vpop.permute.xlu0 %382
        %386 = vrot.lane.b32.xlu0 %v305, 96
        %v387 = vpop.permute.xlu0 %386
        %389 = vmatprep.subr.bf16.mxu0 0
        %390 = vmatpush1.bf16.msra.mxu0 %v381
        %391 = vmatprep.subr.bf16.mxu0 0
        %392 = vmatpush1.bf16.msra.mxu0 %v383
        %393 = vmatprep.subr.bf16.mxu0 0
        %394 = vmatpush1.bf16.msra.mxu0 0
        %395 = vmatprep.subr.bf16.mxu0 0
        %396 = vmatpush1.bf16.msra.mxu0 0
        %397 = vmatprep.subr.bf16.mxu0 0
        %398 = vmatpush1.bf16.msra.mxu0 0
        %399 = vmatprep.subr.bf16.mxu0 0
        %400 = vmatpush1.bf16.msra.mxu0 0
        %401 = vmatprep.subr.bf16.mxu0 0
        %402 = vmatpush1.bf16.msra.mxu0 0
        %403 = vmatprep.subr.bf16.mxu0 0
        %404 = vmatpush1.bf16.msra.mxu0 0
        %405 = vmatprep.subr.bf16.mxu0 0
        %406 = vmatpush1.bf16.msra.mxu0 0
        %407 = vmatprep.subr.bf16.mxu0 0
        %408 = vmatpush1.bf16.msra.mxu0 0
        %409 = vmatprep.subr.bf16.mxu0 0
        %410 = vmatpush1.bf16.msra.mxu0 0
        %411 = vmatprep.subr.bf16.mxu0 0
        %412 = vmatpush1.bf16.msra.mxu0 0
        %413 = vmatprep.subr.bf16.mxu0 0
        %414 = vmatpush1.bf16.msra.mxu0 0
        %415 = vmatprep.subr.bf16.mxu0 0
        %416 = vmatpush1.bf16.msra.mxu0 0
        %417 = vmatprep.subr.bf16.mxu0 0
        %418 = vmatpush1.bf16.msra.mxu0 0
        %419 = vmatprep.subr.bf16.mxu0 0
        %420 = vmatpush1.bf16.msra.mxu0 0
        %421 = vmatprep.mubr.bf16.mxu0 0
        %422 = vmatmul.mubr.bf16.gmra.mrb[0].mxu0 %v321
        %v423 = vpop.f32.mrb[0].mxu0
        %v424 = vadd.f32 %v387, %v423
        %v425 = vpop.f32.mrb[0].mxu0
        %v426 = vpop.f32.mrb[0].mxu0
        %v427 = vpop.f32.mrb[0].mxu0
        %428 = vdwg.mxu0
        %v429 = vpack.c.bf16 %v424, %v424
        %430 = vst.msk [vmem:[%s286] sm:$0xf] %vm364, %v429
        %v431 = vld [vmem:[#allocation5] sm:$0xf]
        %v432 = vld [vmem:[#allocation5 + $0x4] sm:$0xf]
        %v433 = vld [vmem:[#allocation5 + $0x8] sm:$0xf]
        %v434 = vld [vmem:[#allocation5 + $0xc] sm:$0xf]
        %v439 = vunpack.c.l.b16 %v431
        %v440 = vunpack.c.l.b16 %v432
        %v441 = vunpack.c.l.b16 %v433
        %v442 = vunpack.c.l.b16 %v434
        %v443 = vpack.c.b16 %v440, %v439
        %v444 = vpack.c.b16 %v442, %v441
        %445 = vrot.lane.b32.xlu0 %v443, 64
        %v446 = vpop.permute.xlu0 %445
        %447 = vrot.lane.b32.xlu0 %v444, 64
        %v448 = vpop.permute.xlu0 %447
        %451 = vrot.lane.b32.xlu0 %v305, 64
        %v452 = vpop.permute.xlu0 %451
        %454 = vmatprep.subr.bf16.mxu0 0
        %455 = vmatpush1.bf16.msra.mxu0 %v446
        %456 = vmatprep.subr.bf16.mxu0 0
        %457 = vmatpush1.bf16.msra.mxu0 %v448
        %458 = vmatprep.subr.bf16.mxu0 0
        %459 = vmatpush1.bf16.msra.mxu0 0
        %460 = vmatprep.subr.bf16.mxu0 0
        %461 = vmatpush1.bf16.msra.mxu0 0
        %462 = vmatprep.subr.bf16.mxu0 0
        %463 = vmatpush1.bf16.msra.mxu0 0
        %464 = vmatprep.subr.bf16.mxu0 0
        %465 = vmatpush1.bf16.msra.mxu0 0
        %466 = vmatprep.subr.bf16.mxu0 0
        %467 = vmatpush1.bf16.msra.mxu0 0
        %468 = vmatprep.subr.bf16.mxu0 0
        %469 = vmatpush1.bf16.msra.mxu0 0
        %470 = vmatprep.subr.bf16.mxu0 0
        %471 = vmatpush1.bf16.msra.mxu0 0
        %472 = vmatprep.subr.bf16.mxu0 0
        %473 = vmatpush1.bf16.msra.mxu0 0
        %474 = vmatprep.subr.bf16.mxu0 0
        %475 = vmatpush1.bf16.msra.mxu0 0
        %476 = vmatprep.subr.bf16.mxu0 0
        %477 = vmatpush1.bf16.msra.mxu0 0
        %478 = vmatprep.subr.bf16.mxu0 0
        %479 = vmatpush1.bf16.msra.mxu0 0
        %480 = vmatprep.subr.bf16.mxu0 0
        %481 = vmatpush1.bf16.msra.mxu0 0
        %482 = vmatprep.subr.bf16.mxu0 0
        %483 = vmatpush1.bf16.msra.mxu0 0
        %484 = vmatprep.subr.bf16.mxu0 0
        %485 = vmatpush1.bf16.msra.mxu0 0
        %486 = vmatprep.mubr.bf16.mxu0 0
        %487 = vmatmul.mubr.bf16.gmra.mrb[0].mxu0 %v321
        %v488 = vpop.f32.mrb[0].mxu0
        %v489 = vadd.f32 %v452, %v488
        %v490 = vpop.f32.mrb[0].mxu0
        %v491 = vpop.f32.mrb[0].mxu0
        %v492 = vpop.f32.mrb[0].mxu0
        %493 = vdwg.mxu0
        %v494 = vpack.c.bf16 %v489, %v489
        %495 = vst.msk [vmem:[%s293] sm:$0xf] %vm364, %v494
        %s496 = sand.u32 %s119, 1
        %s497 = scalar_lea.sflag [#allocation4], %s496
        %s498 = sand.u32 %s119, 1
        %s499 = smul.addr %s498, 4
        %s500 = scalar_lea.vmem [#allocation7], %s499
        %s501 = sand.u32 %s27, 1
        %s502 = scalar_lea.sflag [#allocation9], %s501
        %s503 = sand.u32 %s147, 1
        %s504 = smul.addr %s503, 4
        %s505 = scalar_lea.vmem [#allocation8], %s504
        %s506 = sand.u32 %s27, 1
        %s507 = scalar_lea.sflag [#allocation9], %s506
        %s508 = sand.u32 %s175, 1
        %s509 = smul.addr %s508, 4
        %s510 = scalar_lea.vmem [#allocation10], %s509
        // Predicated region
        $region41: #{tpu_custom_call.1} parent=31 // pred_check
          %p511 = pneg %p129
        $region42: #{tpu_custom_call.1} parent=31 // pred_check_branch
          %513 = sbr.rel (%p511) target = $region44
        $region43: #{tpu_custom_call.1} parent=31 // pred_region
          %s515 = ssub.s32 64, 64
          %516 = vsyncadd %s497, %s515
          %s517 = sadd.s32 %s32, %s31
          %s518 = smul.addr %s517, 64
          %s519 = scalar_lea.hbm %s3, %s518
          %s521 = sshll.u32 %s500, 4
          %s522 = int_to_ptr.vmem [resolvable:$true] %s521
          %524 = dma.vmem_to_hbm [thread:$0]  %s522, 64, %s519, %s497
        $region44: #{tpu_custom_call.1} parent=31 // pred_fallthru
          _
        // Predicated region
        $region45: #{tpu_custom_call.1} parent=31 // pred_check
          %p525 = pneg %p157
        $region46: #{tpu_custom_call.1} parent=31 // pred_check_branch
          %527 = sbr.rel (%p525) target = $region48
        $region47: #{tpu_custom_call.1} parent=31 // pred_region
          %s529 = ssub.s32 64, 64
          %530 = vsyncadd %s502, %s529
          %s531 = sadd.s32 %s32, %s31
          %s532 = smul.addr %s531, 64
          %s533 = scalar_lea.hbm %s4, %s532
          %s535 = sshll.u32 %s505, 4
          %s536 = int_to_ptr.vmem [resolvable:$true] %s535
          %538 = dma.vmem_to_hbm [thread:$0]  %s536, 64, %s533, %s502
        $region48: #{tpu_custom_call.1} parent=31 // pred_fallthru
          _
        // Predicated region
        $region49: #{tpu_custom_call.1} parent=31 // pred_check
          %p539 = pneg %p185
        $region50: #{tpu_custom_call.1} parent=31 // pred_check_branch
          %541 = sbr.rel (%p539) target = $region52
        $region51: #{tpu_custom_call.1} parent=31 // pred_region
          %s543 = ssub.s32 64, 64
          %544 = vsyncadd %s507, %s543
          %s545 = sadd.s32 %s32, %s31
          %s546 = smul.addr %s545, 64
          %s547 = scalar_lea.hbm %s5, %s546
          %s549 = sshll.u32 %s510, 4
          %s550 = int_to_ptr.vmem [resolvable:$true] %s549
          %552 = dma.vmem_to_hbm [thread:$0]  %s550, 64, %s547, %s507
        $region52: #{tpu_custom_call.1} parent=31 // pred_fallthru
          _
      $region32: #{tpu_custom_call.1} parent=5 // pred_fallthru
        _
      %p553 = scmp.le.s32.totalorder 2, %s22
      // Predicated region
      $region53: #{tpu_custom_call.1} parent=5 // pred_check
        %p554 = pneg %p553
      $region54: #{tpu_custom_call.1} parent=5 // pred_check_branch
        %556 = sbr.rel (%p554) target = $region56
      $region55: #{tpu_custom_call.1} parent=5 // pred_region
        %s557 = ssub.s32 %s22, 2
        // Predicated region
        $region57: #{tpu_custom_call.1} parent=55 // pred_check
          %p558 = pneg %p135
        $region58: #{tpu_custom_call.1} parent=55 // pred_check_branch
          %560 = sbr.rel (%p558) target = $region60
        $region59: #{tpu_custom_call.1} parent=55 // pred_region
          %s561 = sand.u32 %s120, 1
          %s562 = scalar_lea.sflag [#allocation4], %s561
          %s563 = sand.u32 %s120, 1
          %s564 = smul.addr %s563, 4
          %s565 = scalar_lea.vmem [#allocation7], %s564
          %566 = dma.done %s562, 64
        $region60: #{tpu_custom_call.1} parent=55 // pred_fallthru
          _
        // Predicated region
        $region61: #{tpu_custom_call.1} parent=55 // pred_check
          %p567 = pneg %p163
        $region62: #{tpu_custom_call.1} parent=55 // pred_check_branch
          %569 = sbr.rel (%p567) target = $region64
        $region63: #{tpu_custom_call.1} parent=55 // pred_region
          %s570 = sand.u32 %s28, 1
          %s571 = scalar_lea.sflag [#allocation9], %s570
          %s572 = sand.u32 %s148, 1
          %s573 = smul.addr %s572, 4
          %s574 = scalar_lea.vmem [#allocation8], %s573
          %575 = dma.done %s571, 64
        $region64: #{tpu_custom_call.1} parent=55 // pred_fallthru
          _
        // Predicated region
        $region65: #{tpu_custom_call.1} parent=55 // pred_check
          %p576 = pneg %p191
        $region66: #{tpu_custom_call.1} parent=55 // pred_check_branch
          %578 = sbr.rel (%p576) target = $region68
        $region67: #{tpu_custom_call.1} parent=55 // pred_region
          %s579 = sand.u32 %s28, 1
          %s580 = scalar_lea.sflag [#allocation9], %s579
          %s581 = sand.u32 %s176, 1
          %s582 = smul.addr %s581, 4
          %s583 = scalar_lea.vmem [#allocation10], %s582
          %584 = dma.done %s580, 64
        $region68: #{tpu_custom_call.1} parent=55 // pred_fallthru
          _
      $region56: #{tpu_custom_call.1} parent=5 // pred_fallthru
        _
    $region6: #{tpu_custom_call.1} parent=1 // loop_footer
      %s26 = sadd.s32 1, %s22
    $region7: #{tpu_custom_call.1} parent=1 // loop_footer_branch
      %21 = sbr.rel target = $region3
    $region8: #{tpu_custom_call.1} parent=1 // loop_exit
      _
    %585 = vsyncpa [#allocation3], 1
    %s586 = scalar_lea.sflag [#allocation3], 1
    %587 = vsyncpa %s586, 1
    %588 = vsyncpa [#allocation6], 1
    %589 = vsyncpa [#allocation4], 1
    %s590 = scalar_lea.sflag [#allocation4], 1
    %591 = vsyncpa %s590, 1
    %592 = vsyncpa [#allocation9], 1
    %s593 = scalar_lea.sflag [#allocation9], 1
    %594 = vsyncpa %s593, 1

</llo_original>
